<compile_context>
chip_gen: v7x
topology: tpu7x:2x2x1
jax: 0.10.0
libtpu: 0.0.40
codegen_flags: <defaults>
</compile_context>

<pallas_src>
import functools

import jax
import jax.numpy as jnp
from jax.experimental import pallas as pl
from jax.experimental.pallas import tpu as pltpu


_SENTINEL = -(1 << 30)   # int32-safe "never hits" coordinate for padded points
_COORD_CLIP = 1 << 20    # |coord| beyond this can never hit; keeps int math overflow-free


def _round_up(x, m):
    return ((x + m - 1) // m) * m


def _largest_divisor_tile(dim, align, cap):
    """Largest t <= cap with t % align == 0 and dim % t == 0 (dim % align == 0)."""
    t = min(dim, max(cap, align))
    t -= t % align
    while t >= align:
        if dim % t == 0:
            return t
        t -= align
    return dim  # block == full array dim is always legal


def _is_v7x():
    try:
        kind = jax.devices()[0].device_kind.lower()
    except Exception:
        return False
    return ("v7" in kind) or ("7x" in kind)


def _vmem_usage(tile_h, tile_w, tk, out_bytes, num_k):
    out_t = 2 * tile_h * tile_w * out_bytes            # double-buffered output tile
    acc = tile_h * tile_w * 4 if num_k > 1 else 0      # f32 accumulator scratch
    hits = tile_h * tk * 2 + tk * tile_w * 2           # bf16 hit matrices (temporaries)
    pts = 2 * (8 * tk * 4 + tk * 128 * 4)              # double-buffered ys / xs blocks (VMEM-padded)
    return out_t + acc + hits + pts


def _pick_tiles(h_pad, w_pad, tk, out_bytes, num_k, budget):
    """Grow tiles toward the full (padded) image under a VMEM byte budget."""
    tile_w = w_pad if w_pad <= 4096 else _largest_divisor_tile(w_pad, 128, 4096)
    while True:
        for cand in range(h_pad, 7, -8):               # multiples of 8, descending
            if h_pad % cand != 0:
                continue
            if _vmem_usage(cand, tile_w, tk, out_bytes, num_k) <= budget:
                return cand, tile_w
        if tile_w > 128:
            tile_w = _largest_divisor_tile(w_pad, 128, tile_w - 128)
        else:
            return 8, 128                               # minimal tile; always fits in practice


def _masker_kernel_acc(ys_ref, xs_ref, out_ref, acc_ref, *, half, tile_h, tile_w):
    """Multi point-chunk path: accumulate counts over the k (innermost) axis."""
    ti = pl.program_id(1)   # tile row index
    tj = pl.program_id(2)   # tile col index
    k = pl.program_id(3)    # point-chunk index (innermost, "arbitrary")

    @pl.when(k == 0)
    def _():
        acc_ref[...] = jnp.zeros_like(acc_ref)

    tk = ys_ref.shape[2]
    y = ys_ref[0, 0:1, :]            # (1, tk)  int32 row coords, points on lanes
    x = xs_ref[0, :, 0:1]            # (tk, 1)  int32 col coords, points on sublanes

    # Integer pixel coordinates generated directly at lane-dense broadcast shapes.
    h = jax.lax.broadcasted_iota(jnp.int32, (tile_h, tk), 0) + ti * tile_h
    w = jax.lax.broadcasted_iota(jnp.int32, (tk, tile_w), 1) + tj * tile_w

    # Pure-int hit tests; cast the 0/1 result to bf16 for the fast MXU path.
    row_hits = (jnp.abs(h - y) <= half).astype(jnp.bfloat16)   # (tile_h, tk)
    col_hits = (jnp.abs(w - x) <= half).astype(jnp.bfloat16)   # (tk, tile_w), pre-transposed

    # counts[h, w] += sum_n row_hits[h, n] * col_hits[n, w]   (MXU, f32 accum)
    acc_ref[...] += jnp.dot(row_hits, col_hits,
                            preferred_element_type=jnp.float32)

    @pl.when(k == pl.num_programs(3) - 1)
    def _():
        out_ref[0] = (acc_ref[...] > 0.5).astype(out_ref.dtype)


def _masker_kernel_single(ys_ref, xs_ref, out_ref, *, half, tile_h, tile_w):
    """Single point-chunk fast path: no accumulator scratch, no init/finalize."""
    ti = pl.program_id(1)
    tj = pl.program_id(2)

    tk = ys_ref.shape[2]
    y = ys_ref[0, 0:1, :]            # (1, tk)
    x = xs_ref[0, :, 0:1]            # (tk, 1)

    h = jax.lax.broadcasted_iota(jnp.int32, (tile_h, tk), 0) + ti * tile_h
    w = jax.lax.broadcasted_iota(jnp.int32, (tk, tile_w), 1) + tj * tile_w

    row_hits = (jnp.abs(h - y) <= half).astype(jnp.bfloat16)   # (tile_h, tk)
    col_hits = (jnp.abs(w - x) <= half).astype(jnp.bfloat16)   # (tk, tile_w)

    counts = jnp.dot(row_hits, col_hits, preferred_element_type=jnp.float32)
    out_ref[0] = (counts > 0.5).astype(out_ref.dtype)


def masker_forward(proj_points,
                   image_height=256,
                   image_width=256,
                   mask_patch_width=5,
                   epsilon=1e-05,
                   threshold=None,
                   *,
                   tile_h=None,
                   tile_w=None,
                   out_dtype=jnp.float32,
                   vmem_limit_bytes=40 * 1024 * 1024,
                   vmem_budget_bytes=24 * 1024 * 1024):
    """Forward pass of `Masker` (point_masker.forward).

    out_dtype can be set to jnp.bfloat16 / jnp.uint8 to halve / quarter the
    HBM writeback (mask values are exactly 0/1); float32 kept as the default
    to match the reference module's output dtype.
    """
    # TODO(synk): threshold / epsilon only feed the reference's custom backward;
    # the CUDA forward is assumed not to use them.
    del epsilon, threshold
    B, N, two = proj_points.shape
    assert two == 2

    # Pad the image so output stores are lane-dense (unmasked vst) and
    # sublane-aligned; slice the padding off afterwards.
    h_pad = _round_up(image_height, 8)
    w_pad = _round_up(image_width, 128)

    # ---- point preprocessing (hoisted out of the kernel, all int32) ---------
    pts = jnp.round(proj_points.astype(jnp.float32))
    pts = jnp.clip(pts, -_COORD_CLIP, _COORD_CLIP).astype(jnp.int32)   # (B, N, 2)

    # Minimal sentinel padding: N -> multiple of 256; chunk size tk in {256, 512}.
    n_pad = _round_up(max(N, 1), 256)
    if n_pad <= 512:
        tk = n_pad
    elif n_pad % 512 == 0:
        tk = 512
    else:
        tk = 256
    if n_pad != N:
        pts = jnp.pad(pts, ((0, 0), (0, n_pad - N), (0, 0)),
                      constant_values=_SENTINEL)

    xs = pts[:, :, 0:1]                              # (B, n_pad, 1): x (cols), points on sublanes
    ys = jnp.transpose(pts[:, :, 1:2], (0, 2, 1))    # (B, 1, n_pad): y (rows), points on lanes

    num_k = n_pad // tk
    out_bytes = jnp.dtype(out_dtype).itemsize

    # ---- tile selection ------------------------------------------------------
    if tile_h is None or tile_w is None:
        th_sel, tw_sel = _pick_tiles(h_pad, w_pad, tk, out_bytes, num_k,
                                     vmem_budget_bytes)
        if tile_h is None:
            tile_h = th_sel
        if tile_w is None:
            tile_w = tw_sel
    assert h_pad % tile_h == 0 and w_pad % tile_w == 0
    assert tile_h % 8 == 0 and tile_w % 128 == 0

    # Megacore split only on v7x (v5e/v6e have a single TensorCore).
    if (_is_v7x()
            and B * (h_pad // tile_h) * (w_pad // tile_w) < 2
            and tile_h % 16 == 0):
        tile_h //= 2

    half = int(mask_patch_width) // 2
    grid = (B, h_pad // tile_h, w_pad // tile_w, num_k)

    if num_k == 1:
        kernel = functools.partial(_masker_kernel_single,
                                   half=half, tile_h=tile_h, tile_w=tile_w)
        scratch = []
    else:
        kernel = functools.partial(_masker_kernel_acc,
                                   half=half, tile_h=tile_h, tile_w=tile_w)
        scratch = [pltpu.VMEM((tile_h, tile_w), jnp.float32)]

    out = pl.pallas_call(
        kernel,
        out_shape=jax.ShapeDtypeStruct((B, h_pad, w_pad), out_dtype),
        grid_spec=pltpu.PrefetchScalarGridSpec(
            num_scalar_prefetch=0,
            grid=grid,
            in_specs=[
                # One point-chunk per k for this batch element; same for every
                # image tile.
                pl.BlockSpec((1, 1, tk), lambda b, i, j, k: (b, 0, k)),   # ys
                pl.BlockSpec((1, tk, 1), lambda b, i, j, k: (b, k, 0)),   # xs
            ],
            out_specs=pl.BlockSpec((1, tile_h, tile_w),
                                   lambda b, i, j, k: (b, i, j)),
            scratch_shapes=scratch,
        ),
        compiler_params=pltpu.CompilerParams(
            dimension_semantics=("parallel", "parallel", "parallel",
                                 "arbitrary"),
            vmem_limit_bytes=int(vmem_limit_bytes)),
    )(ys, xs)

    if h_pad != image_height or w_pad != image_width:
        out = out[:, :image_height, :image_width]
    return out


def masker_reference(proj_points, image_height, image_width, mask_patch_width):
    """Pure-JAX reference of the same semantics (for verification)."""
    half = mask_patch_width // 2
    x = jnp.round(proj_points[..., 0].astype(jnp.float32))      # (B, N)
    y = jnp.round(proj_points[..., 1].astype(jnp.float32))      # (B, N)
    hh = jnp.arange(image_height, dtype=jnp.float32)
    ww = jnp.arange(image_width, dtype=jnp.float32)
    row = jnp.abs(hh[None, :, None] - y[:, None, :]) <= half    # (B, H, N)
    col = jnp.abs(ww[None, :, None] - x[:, None, :]) <= half    # (B, W, N)
    hit = jnp.any(row[:, :, None, :] & col[:, None, :, :], axis=-1)
    return hit.astype(jnp.float32)                              # (B, H, W)


if __name__ == "__main__":
    key = jax.random.PRNGKey(0)

    # ---- test 1: module defaults (256x256, patch 5), small N, single chunk --
    B, N = 2, 64
    IMAGE_H, IMAGE_W = 256, 256
    MASK_PATCH_WIDTH = 5
    THRESHOLD = 0.5  # unused in forward (backward-only in the reference)

    key, k1 = jax.random.split(key)
    proj_points = jax.random.uniform(
        k1, (B, N, 2), dtype=jnp.float32, minval=-8.0, maxval=IMAGE_W + 8.0)

    mask = masker_forward(proj_points,
                          image_height=IMAGE_H,
                          image_width=IMAGE_W,
                          mask_patch_width=MASK_PATCH_WIDTH,
                          threshold=THRESHOLD)
    mask = jax.block_until_ready(mask)

    ref = masker_reference(proj_points, IMAGE_H, IMAGE_W, MASK_PATCH_WIDTH)
    assert mask.shape == (B, IMAGE_H, IMAGE_W)
    assert mask.dtype == jnp.float32
    assert bool(jnp.all(mask == ref))

    # ---- test 2: ragged image size + multi point-chunk accumulator path -----
    B2, N2 = 1, 600
    H2, W2, PW2 = 100, 200, 3
    key, k2 = jax.random.split(key)
    pts2 = jax.random.uniform(
        k2, (B2, N2, 2), dtype=jnp.float32, minval=-6.0, maxval=W2 + 6.0)

    mask2 = masker_forward(pts2, image_height=H2, image_width=W2,
                           mask_patch_width=PW2, threshold=THRESHOLD)
    mask2 = jax.block_until_ready(mask2)
    ref2 = masker_reference(pts2, H2, W2, PW2)
    assert mask2.shape == (B2, H2, W2)
    assert bool(jnp.all(mask2 == ref2))

    print("KERNEL_OK")
</pallas_src>

<mosaic_0001>
module attributes {stable_mosaic.version = 11 : i64} {
  func.func @_masker_kernel_single(%arg0: i32, %arg1: i32, %arg2: i32, %arg3: i32, %arg4: memref<1x1x256xi32, #tpu.memory_space<vmem>>, %arg5: memref<1x256x1xi32, #tpu.memory_space<vmem>>, %arg6: memref<1x256x256xf32, #tpu.memory_space<vmem>>) attributes {dimension_semantics = [#tpu.dimension_semantics<parallel>, #tpu.dimension_semantics<parallel>, #tpu.dimension_semantics<parallel>, #tpu.dimension_semantics<arbitrary>], iteration_bounds = array<i64: 2, 1, 1, 1>, scalar_prefetch = 0 : i64, scratch_operands = 0 : i64, tpu.core_type = #tpu.core_type<tc>, window_params = [{transform_indices = @transform_0, window_bounds = array<i64: 1, 1, 256>}, {transform_indices = @transform_1, window_bounds = array<i64: 1, 256, 1>}, {transform_indices = @transform_2, window_bounds = array<i64: 1, 256, 256>}]} {
    %c0 = arith.constant 0 : index
    %c0_0 = arith.constant 0 : index
    %c0_1 = arith.constant 0 : index
    %0 = vector.load %arg4[%c0, %c0_0, %c0_1] : memref<1x1x256xi32, #tpu.memory_space<vmem>>, vector<1x1x256xi32>
    %1 = vector.shape_cast %0 : vector<1x1x256xi32> to vector<1x256xi32>
    %c0_2 = arith.constant 0 : index
    %c0_3 = arith.constant 0 : index
    %c0_4 = arith.constant 0 : index
    %2 = vector.load %arg5[%c0_2, %c0_3, %c0_4] : memref<1x256x1xi32, #tpu.memory_space<vmem>>, vector<1x256x1xi32>
    %3 = vector.shape_cast %2 : vector<1x256x1xi32> to vector<256x1xi32>
    %4 = tpu.iota {dimensions = array<i32: 0>} : vector<256x256xi32>
    %c256_i32 = arith.constant 256 : i32
    %5 = arith.muli %arg1, %c256_i32 : i32
    %6 = vector.broadcast %5 : i32 to vector<256x256xi32>
    %7 = arith.addi %4, %6 : vector<256x256xi32>
    %8 = tpu.iota {dimensions = array<i32: 1>} : vector<256x256xi32>
    %c256_i32_5 = arith.constant 256 : i32
    %9 = arith.muli %arg2, %c256_i32_5 : i32
    %10 = vector.broadcast %9 : i32 to vector<256x256xi32>
    %11 = arith.addi %8, %10 : vector<256x256xi32>
    %12 = vector.broadcast %1 : vector<1x256xi32> to vector<256x256xi32>
    %13 = arith.subi %7, %12 : vector<256x256xi32>
    %14 = math.absi %13 : vector<256x256xi32>
    %c2_i32 = arith.constant 2 : i32
    %15 = vector.broadcast %c2_i32 : i32 to vector<256x256xi32>
    %16 = arith.cmpi sle, %14, %15 : vector<256x256xi32>
    %17 = arith.extui %16 : vector<256x256xi1> to vector<256x256xi32>
    %18 = arith.sitofp %17 : vector<256x256xi32> to vector<256x256xf32>
    %19 = arith.truncf %18 : vector<256x256xf32> to vector<256x256xbf16>
    %20 = vector.broadcast %3 : vector<256x1xi32> to vector<256x256xi32>
    %21 = arith.subi %11, %20 : vector<256x256xi32>
    %22 = math.absi %21 : vector<256x256xi32>
    %c2_i32_6 = arith.constant 2 : i32
    %23 = vector.broadcast %c2_i32_6 : i32 to vector<256x256xi32>
    %24 = arith.cmpi sle, %22, %23 : vector<256x256xi32>
    %25 = arith.extui %24 : vector<256x256xi1> to vector<256x256xi32>
    %26 = arith.sitofp %25 : vector<256x256xi32> to vector<256x256xf32>
    %27 = arith.truncf %26 : vector<256x256xf32> to vector<256x256xbf16>
    %cst = arith.constant dense<0.000000e+00> : vector<256x256xf32>
    %28 = tpu.matmul %19, %27, %cst {dimension_numbers = #tpu.dot_dimension_numbers<[1], [0], [0], [1], [0, 0, 1, 1], [], []>} : vector<256x256xbf16>, vector<256x256xbf16>, vector<256x256xf32> -> vector<256x256xf32>
    %cst_7 = arith.constant 5.000000e-01 : f32
    %29 = vector.broadcast %cst_7 : f32 to vector<256x256xf32>
    %30 = arith.cmpf ogt, %28, %29 : vector<256x256xf32>
    %31 = arith.extui %30 : vector<256x256xi1> to vector<256x256xi32>
    %32 = arith.sitofp %31 : vector<256x256xi32> to vector<256x256xf32>
    %c0_8 = arith.constant 0 : index
    %c0_9 = arith.constant 0 : index
    %c0_10 = arith.constant 0 : index
    %33 = vector.load %arg6[%c0_8, %c0_9, %c0_10] : memref<1x256x256xf32, #tpu.memory_space<vmem>>, vector<1x256x256xf32>
    %34 = vector.shape_cast %33 : vector<1x256x256xf32> to vector<256x256xf32>
    %35 = vector.shape_cast %32 : vector<256x256xf32> to vector<1x256x256xf32>
    tpu.vector_store %arg6[%c0_8, %c0_9, %c0_10], %35 {strides = array<i32>} : memref<1x256x256xf32, #tpu.memory_space<vmem>>, vector<1x256x256xf32>,
    return
  }
  func.func @transform_0(%arg0: i32, %arg1: i32, %arg2: i32, %arg3: i32) -> (i32, i32, i32) {
    %c0_i32 = arith.constant 0 : i32
    %c0_i32_0 = arith.constant 0 : i32
    return %arg0, %c0_i32, %arg3 : i32, i32, i32
  }
  func.func @transform_1(%arg0: i32, %arg1: i32, %arg2: i32, %arg3: i32) -> (i32, i32, i32) {
    %c0_i32 = arith.constant 0 : i32
    %c0_i32_0 = arith.constant 0 : i32
    return %arg0, %arg3, %c0_i32 : i32, i32, i32
  }
  func.func @transform_2(%arg0: i32, %arg1: i32, %arg2: i32, %arg3: i32) -> (i32, i32, i32) {
    %c0_i32 = arith.constant 0 : i32
    return %arg0, %arg1, %arg2 : i32, i32, i32
  }
}

</mosaic_0001>

<llo_original>
// kernel: tpu_custom_call.1
$region0: #{tpu_custom_call.1}
  #allocation0 [shape = 'u32[]', space=smem, size = 0x4, offset = 0x4, fixed_abs, tag = 'smem constant byte address 0x4 - core index']
  #allocation1 [shape = 'u32[144,128]{1,0:T(1,128)}', space=vmem, size = 0x12000, scoped, tag = 'internal scratch']
  %s0 = inlined_call_operand.vmem [shape: s32[2,1,256], index: 0, kind: input, shape index: {}]
  %s1 = inlined_call_operand.vmem [shape: s32[2,256,1], index: 1, kind: input, shape index: {}]
  %s2 = inlined_call_operand.hbm [shape: f32[2,256,256], index: 2, kind: output, shape index: {}]
  %s3 = sld [smem:[#allocation0]]
  $region41: #{tpu_custom_call.1} parent=0
    _
  %s5 = ssub.s32 1, %s3
  %s6 = scalar_select 0, %s5, %s3
  $region1: #{tpu_custom_call.1} parent=0
    #allocation2 [shape = 'u8[524288]{0}', space=vmem, size = 0x80000, scoped, tag = 'output window, operand 0']
    #allocation3 [shape = 's32[2]{0}', space=sflag, size = 0x8, scoped, tag = 'scoped memory for tpu_custom_call.1']
    %7 = vsyncpa [#allocation3], 0
    %s8 = scalar_lea.sflag [#allocation3], 1
    %9 = vsyncpa %s8, 0
    loop: start=0, step=1, limit=4
    $region2: #{tpu_custom_call.1} parent=1 // loop_pre_header
      _
    $region3: #{tpu_custom_call.1} parent=1 // loop_header
      %s11 = sphi 0, %s15
      %p12 = scmp.ge.s32.totalorder %s11, 4
      %s18 = sphi 0, %s44
      %s19 = sphi 0, %s40
      %s20 = sphi 0, %s36
      %s21 = sphi 0, %s32
      %s22 = sphi 0, %s18
      %s23 = sphi 0, %s19
      %s24 = sphi 0, %s20
      %s25 = sphi 0, %s21
      %s26 = sphi 0, %s22
      %s27 = sphi 0, %s23
      %s28 = sphi 0, %s24
      %s29 = sphi 0, %s25
      %s49 = sphi 0, %s51
      %s52 = sphi 0, %s49
      %s53 = sphi 0, %s52
      %s69 = sphi 0, %s53
      %s77 = sphi 0, %s79
      %s80 = sphi 0, %s77
      %s81 = sphi 0, %s80
      %s97 = sphi 0, %s81
      %s107 = sphi 0, %s109
      %s110 = sphi 0, %s107
      %s111 = sphi 0, %s110
      %s127 = sphi 0, %s111
    $region4: #{tpu_custom_call.1} parent=1 // loop_header_branch
      %14 = sbr.rel (%p12) target = $region8
    $region5: #{tpu_custom_call.1} parent=1 // loop_body
      %s16 = ssub.s32 %s11, 1
      %s17 = ssub.s32 %s11, 2
      %s30 = sadd.s32 1, %s21
      %p31 = scmp.ge.s32.totalorder %s30, 1
      %s32 = scalar_select %p31, 0, %s30
      %s33 = sadd.s32 1, %s20
      %s34 = scalar_select %p31, %s33, %s20
      %p35 = scmp.ge.s32.totalorder %s34, 1
      %s36 = scalar_select %p35, 0, %s34
      %s37 = sadd.s32 1, %s19
      %s38 = scalar_select %p35, %s37, %s19
      %p39 = scmp.ge.s32.totalorder %s38, 1
      %s40 = scalar_select %p39, 0, %s38
      %s41 = sadd.s32 1, %s18
      %s42 = scalar_select %p39, %s41, %s18
      %p43 = scmp.ge.s32.totalorder %s42, 2
      %s44 = scalar_select %p43, 0, %s42
      %s45 = ssub.s32 %s18, %s44
      %s46 = ssub.s32 %s21, %s32
      %s47 = sor.u32 %s45, %s46
      %p48 = scmp.eq.s32.totalorder %s47, 0
      %s50 = sadd.s32 %s49, 1
      %s51 = scalar_select %p48, %s49, %s50
      %p54 = pneg %p48
      %p55 = scmp.eq.s32.totalorder %s11, 1
      %p56 = por %p54, %p55
      %p57 = scmp.ne.s32.totalorder %s49, %s52
      %p58 = scmp.eq.s32.totalorder %s11, 0
      %p59 = por %p57, %p58
      %p60 = scmp.ne.s32.totalorder %s49, %s52
      %p61 = scmp.eq.s32.totalorder %s16, 1
      %p62 = por %p60, %p61
      %p63 = scmp.ne.s32.totalorder %s52, %s53
      %p64 = scmp.eq.s32.totalorder %s16, 0
      %p65 = por %p63, %p64
      %p66 = scmp.ne.s32.totalorder %s52, %s53
      %p67 = scmp.eq.s32.totalorder %s17, 1
      %p68 = por %p66, %p67
      %p70 = scmp.ne.s32.totalorder %s53, %s69
      %p71 = scmp.eq.s32.totalorder %s17, 0
      %p72 = por %p70, %p71
      %s73 = ssub.s32 %s18, %s44
      %s74 = ssub.s32 %s21, %s32
      %s75 = sor.u32 %s73, %s74
      %p76 = scmp.eq.s32.totalorder %s75, 0
      %s78 = sadd.s32 %s77, 1
      %s79 = scalar_select %p76, %s77, %s78
      %p82 = pneg %p76
      %p83 = scmp.eq.s32.totalorder %s11, 1
      %p84 = por %p82, %p83
      %p85 = scmp.ne.s32.totalorder %s77, %s80
      %p86 = scmp.eq.s32.totalorder %s11, 0
      %p87 = por %p85, %p86
      %p88 = scmp.ne.s32.totalorder %s77, %s80
      %p89 = scmp.eq.s32.totalorder %s16, 1
      %p90 = por %p88, %p89
      %p91 = scmp.ne.s32.totalorder %s80, %s81
      %p92 = scmp.eq.s32.totalorder %s16, 0
      %p93 = por %p91, %p92
      %p94 = scmp.ne.s32.totalorder %s80, %s81
      %p95 = scmp.eq.s32.totalorder %s17, 1
      %p96 = por %p94, %p95
      %p98 = scmp.ne.s32.totalorder %s81, %s97
      %p99 = scmp.eq.s32.totalorder %s17, 0
      %p100 = por %p98, %p99
      %s101 = ssub.s32 %s18, %s44
      %s102 = ssub.s32 %s19, %s40
      %s103 = sor.u32 %s101, %s102
      %s104 = ssub.s32 %s20, %s36
      %s105 = sor.u32 %s103, %s104
      %p106 = scmp.eq.s32.totalorder %s105, 0
      %s108 = sadd.s32 %s107, 1
      %s109 = scalar_select %p106, %s107, %s108
      %p112 = pneg %p106
      %p113 = scmp.eq.s32.totalorder %s11, 1
      %p114 = por %p112, %p113
      %p115 = scmp.ne.s32.totalorder %s107, %s110
      %p116 = scmp.eq.s32.totalorder %s11, 0
      %p117 = por %p115, %p116
      %p118 = scmp.ne.s32.totalorder %s107, %s110
      %p119 = scmp.eq.s32.totalorder %s16, 1
      %p120 = por %p118, %p119
      %p121 = scmp.ne.s32.totalorder %s110, %s111
      %p122 = scmp.eq.s32.totalorder %s16, 0
      %p123 = por %p121, %p122
      %p124 = scmp.ne.s32.totalorder %s110, %s111
      %p125 = scmp.eq.s32.totalorder %s17, 1
      %p126 = por %p124, %p125
      %p128 = scmp.ne.s32.totalorder %s111, %s127
      %p129 = scmp.eq.s32.totalorder %s17, 0
      %p130 = por %p128, %p129
      %p131 = scmp.le.s32.totalorder 1, %s11
      %p132 = scmp.lt.s32.totalorder %s11, 3
      %p133 = pnand %p131, %p132
      %p134 = pneg %p133
      // Predicated region
      $region9: #{tpu_custom_call.1} parent=5 // pred_check
        _
      $region10: #{tpu_custom_call.1} parent=5 // pred_check_branch
        %136 = sbr.rel (%p133) target = $region12
      $region11: #{tpu_custom_call.1} parent=5 // pred_region
        %s137 = ssub.s32 %s11, 1
      $region12: #{tpu_custom_call.1} parent=5 // pred_fallthru
        _
      %p138 = scmp.lt.s32.totalorder %s11, 2
      // Predicated region
      $region13: #{tpu_custom_call.1} parent=5 // pred_check
        %p139 = pneg %p138
      $region14: #{tpu_custom_call.1} parent=5 // pred_check_branch
        %141 = sbr.rel (%p139) target = $region16
      $region15: #{tpu_custom_call.1} parent=5 // pred_region
        // Predicated region
        $region17: #{tpu_custom_call.1} parent=15 // pred_check
          %p142 = pneg %p59
        $region18: #{tpu_custom_call.1} parent=15 // pred_check_branch
          %144 = sbr.rel (%p142) target = $region20
        $region19: #{tpu_custom_call.1} parent=15 // pred_region
          %s145 = smul.u32 2, %s21
          %p146 = scmp.lt.s32.totalorder %s18, 1
          %s147 = scalar_select %p146, %s18, 1
          %p148 = scmp.lt.s32.totalorder %s145, 1
          %s149 = scalar_select %p148, %s145, 1
          %s150 = smul.addr %s147, 2
          %s151 = sadd.s32 %s149, %s150
          %s152 = scalar_lea.vmem %s0, %s151
          %s153 = smul.u32 2, %s21
        $region20: #{tpu_custom_call.1} parent=15 // pred_fallthru
          _
        // Predicated region
        $region21: #{tpu_custom_call.1} parent=15 // pred_check
          %p154 = pneg %p87
        $region22: #{tpu_custom_call.1} parent=15 // pred_check_branch
          %156 = sbr.rel (%p154) target = $region24
        $region23: #{tpu_custom_call.1} parent=15 // pred_region
          %s157 = smul.u32 32, %s21
          %p158 = scmp.lt.s32.totalorder %s18, 1
          %s159 = scalar_select %p158, %s18, 1
          %p160 = scmp.lt.s32.totalorder %s157, 31
          %s161 = scalar_select %p160, %s157, 31
          %s162 = smul.addr %s159, 32
          %s163 = sadd.s32 %s161, %s162
          %s164 = smul.addr %s163, 8
          %s165 = scalar_lea.vmem %s1, %s164
          %s166 = smul.u32 32, %s21
        $region24: #{tpu_custom_call.1} parent=15 // pred_fallthru
          _
      $region16: #{tpu_custom_call.1} parent=5 // pred_fallthru
        _
      %p167 = scmp.le.s32.totalorder 1, %s11
      %p168 = scmp.lt.s32.totalorder %s11, 3
      %p169 = pnand %p167, %p168
      %p170 = pneg %p169
      // Predicated region
      $region25: #{tpu_custom_call.1} parent=5 // pred_check
        _
      $region26: #{tpu_custom_call.1} parent=5 // pred_check_branch
        %172 = sbr.rel (%p169) target = $region28
      $region27: #{tpu_custom_call.1} parent=5 // pred_region
        %s173 = ssub.s32 %s11, 1
        %s174 = smul.u32 2, %s25
        %p175 = scmp.lt.s32.totalorder %s22, 1
        %s176 = scalar_select %p175, %s22, 1
        %p177 = scmp.lt.s32.totalorder %s174, 1
        %s178 = scalar_select %p177, %s174, 1
        %s179 = smul.addr %s176, 2
        %s180 = sadd.s32 %s178, %s179
        %s181 = scalar_lea.vmem %s0, %s180
        %p182 = pneg %p65
        %p183 = pneg %p62
        %s184 = smul.u32 32, %s25
        %p185 = scmp.lt.s32.totalorder %s22, 1
        %s186 = scalar_select %p185, %s22, 1
        %p187 = scmp.lt.s32.totalorder %s184, 31
        %s188 = scalar_select %p187, %s184, 31
        %s189 = smul.addr %s186, 32
        %s190 = sadd.s32 %s188, %s189
        %s191 = smul.addr %s190, 8
        %s192 = scalar_lea.vmem %s1, %s191
        %p193 = pneg %p93
        %p194 = pneg %p90
        %p195 = pneg %p123
        %p196 = pneg %p120
        %s197 = sand.u32 %s110, 1
        %s198 = scalar_lea.sflag [#allocation3], %s197
        %s199 = sand.u32 %s110, 1
        %s200 = smul.addr %s199, 512
        %s201 = scalar_lea.vmem [#allocation2], %s200
        %s202 = smul.u32 2, %s25
        %p203 = scmp.lt.s32.totalorder %s22, 1
        %s204 = scalar_select %p203, %s22, 1
        %p205 = scmp.lt.s32.totalorder %s202, 1
        %s206 = scalar_select %p205, %s202, 1
        %s207 = smul.addr %s204, 2
        %s208 = sadd.s32 %s206, %s207
        %s209 = scalar_lea.vmem %s0, %s208
        %s210 = smul.u32 2, %s25
        %s211 = smul.u32 32, %s25
        %p212 = scmp.lt.s32.totalorder %s22, 1
        %s213 = scalar_select %p212, %s22, 1
        %p214 = scmp.lt.s32.totalorder %s211, 31
        %s215 = scalar_select %p214, %s211, 31
        %s216 = smul.addr %s213, 32
        %s217 = sadd.s32 %s215, %s216
        %s218 = smul.addr %s217, 8
        %s219 = scalar_lea.vmem %s1, %s218
        %s220 = smul.u32 32, %s25
        %s221 = smul.u32 32, %s23
        %s222 = smul.u32 2, %s24
        %v223 = vld [vmem:[%s209] sm:$0x3]
        %v224 = vld [vmem:[%s219] sm:$0xff]
        %v225 = vld [vmem:[%s219 + $0x8] sm:$0xff]
        %v226 = vld [vmem:[%s219 + $0x10] sm:$0xff]
        %v227 = vld [vmem:[%s219 + $0x18] sm:$0xff]
        %v228 = vld [vmem:[%s219 + $0x20] sm:$0xff]
        %v229 = vld [vmem:[%s219 + $0x28] sm:$0xff]
        %v230 = vld [vmem:[%s219 + $0x30] sm:$0xff]
        %v231 = vld [vmem:[%s219 + $0x38] sm:$0xff]
        %v232 = vld [vmem:[%s219 + $0x40] sm:$0xff]
        %v233 = vld [vmem:[%s219 + $0x48] sm:$0xff]
        %v234 = vld [vmem:[%s219 + $0x50] sm:$0xff]
        %v235 = vld [vmem:[%s219 + $0x58] sm:$0xff]
        %v236 = vld [vmem:[%s219 + $0x60] sm:$0xff]
        %v237 = vld [vmem:[%s219 + $0x68] sm:$0xff]
        %v238 = vld [vmem:[%s219 + $0x70] sm:$0xff]
        %v239 = vld [vmem:[%s219 + $0x78] sm:$0xff]
        %v240 = vld [vmem:[%s219 + $0x80] sm:$0xff]
        %v241 = vld [vmem:[%s219 + $0x88] sm:$0xff]
        %v242 = vld [vmem:[%s219 + $0x90] sm:$0xff]
        %v243 = vld [vmem:[%s219 + $0x98] sm:$0xff]
        %v244 = vld [vmem:[%s219 + $0xa0] sm:$0xff]
        %v245 = vld [vmem:[%s219 + $0xa8] sm:$0xff]
        %v246 = vld [vmem:[%s219 + $0xb0] sm:$0xff]
        %v247 = vld [vmem:[%s219 + $0xb8] sm:$0xff]
        %v248 = vld [vmem:[%s219 + $0xc0] sm:$0xff]
        %v249 = vld [vmem:[%s219 + $0xc8] sm:$0xff]
        %v250 = vld [vmem:[%s219 + $0xd0] sm:$0xff]
        %v251 = vld [vmem:[%s219 + $0xd8] sm:$0xff]
        %v252 = vld [vmem:[%s219 + $0xe0] sm:$0xff]
        %v253 = vld [vmem:[%s219 + $0xe8] sm:$0xff]
        %v254 = vld [vmem:[%s219 + $0xf0] sm:$0xff]
        %v255 = vld [vmem:[%s219 + $0xf8] sm:$0xff]
        %v256 = vlaneseq
        %v257 = vshrl.u32 %v256, 7
        %v258 = vadd.s32 %v257, 8
        %v259 = vadd.s32 %v257, 16
        %v260 = vadd.s32 %v257, 24
        %v261 = vadd.s32 %v257, 32
        %v262 = vadd.s32 %v257, 40
        %v263 = vadd.s32 %v257, 48
        %v264 = vadd.s32 %v257, 56
        %v265 = vadd.s32 %v257, 64
        %v266 = vadd.s32 %v257, 72
        %v267 = vadd.s32 %v257, 80
        %v268 = vadd.s32 %v257, 88
        %v269 = vadd.s32 %v257, 96
        %v270 = vadd.s32 %v257, 104
        %v271 = vadd.s32 %v257, 112
        %v272 = vadd.s32 %v257, 120
        %v273 = vadd.s32 %v257, 128
        %v274 = vadd.s32 %v257, 136
        %v275 = vadd.s32 %v257, 144
        %v276 = vadd.s32 %v257, 152
        %v277 = vadd.s32 %v257, 160
        %v278 = vadd.s32 %v257, 168
        %v279 = vadd.s32 %v257, 176
        %v280 = vadd.s32 %v257, 184
        %v281 = vadd.s32 %v257, 192
        %v282 = vadd.s32 %v257, 200
        %v283 = vadd.s32 %v257, 208
        %v284 = vadd.s32 %v257, 216
        %v285 = vadd.s32 %v257, 224
        %v286 = vadd.s32 %v257, 232
        %v287 = vadd.s32 %v257, 240
        %v288 = vadd.s32 %v257, 248
        %s289 = smul.u32 %s23, 256
        %v290 = vstv %s289
        %v291 = vadd.s32 %v257, %v290
        %v292 = vadd.s32 %v258, %v290
        %v293 = vadd.s32 %v259, %v290
        %v294 = vadd.s32 %v260, %v290
        %v295 = vadd.s32 %v261, %v290
        %v296 = vadd.s32 %v262, %v290
        %v297 = vadd.s32 %v263, %v290
        %v298 = vadd.s32 %v264, %v290
        %v299 = vadd.s32 %v265, %v290
        %v300 = vadd.s32 %v266, %v290
        %v301 = vadd.s32 %v267, %v290
        %v302 = vadd.s32 %v268, %v290
        %v303 = vadd.s32 %v269, %v290
        %v304 = vadd.s32 %v270, %v290
        %v305 = vadd.s32 %v271, %v290
        %v306 = vadd.s32 %v272, %v290
        %v307 = vadd.s32 %v273, %v290
        %v308 = vadd.s32 %v274, %v290
        %v309 = vadd.s32 %v275, %v290
        %v310 = vadd.s32 %v276, %v290
        %v311 = vadd.s32 %v277, %v290
        %v312 = vadd.s32 %v278, %v290
        %v313 = vadd.s32 %v279, %v290
        %v314 = vadd.s32 %v280, %v290
        %v315 = vadd.s32 %v281, %v290
        %v316 = vadd.s32 %v282, %v290
        %v317 = vadd.s32 %v283, %v290
        %v318 = vadd.s32 %v284, %v290
        %v319 = vadd.s32 %v285, %v290
        %v320 = vadd.s32 %v286, %v290
        %v321 = vadd.s32 %v287, %v290
        %v322 = vadd.s32 %v288, %v290
        %v323 = vlaneseq
        %v324 = vand.u32 %v323, 127
        %v325 = vadd.s32 %v324, 128
        %s326 = smul.u32 %s24, 256
        %v327 = vstv %s326
        %v328 = vadd.s32 %v324, %v327
        %v329 = vadd.s32 %v325, %v327
        %v330 = vlaneseq
        %v331 = vshrl.u32 %v330, 7
        %v332 = vsub.s32 0, %v331
        %v333 = vrot.slane %v223, %v332
        %v334 = vlaneseq
        %v335 = vshrl.u32 %v334, 7
        %v336 = vsub.s32 1, %v335
        %v337 = vrot.slane %v223, %v336
        %v338 = vsub.s32 %v291, %v333
        %v339 = vsub.s32 %v291, %v337
        %v340 = vsub.s32 %v292, %v333
        %v341 = vsub.s32 %v292, %v337
        %v342 = vsub.s32 %v293, %v333
        %v343 = vsub.s32 %v293, %v337
        %v344 = vsub.s32 %v294, %v333
        %v345 = vsub.s32 %v294, %v337
        %v346 = vsub.s32 %v295, %v333
        %v347 = vsub.s32 %v295, %v337
        %v348 = vsub.s32 %v296, %v333
        %v349 = vsub.s32 %v296, %v337
        %v350 = vsub.s32 %v297, %v333
        %v351 = vsub.s32 %v297, %v337
        %v352 = vsub.s32 %v298, %v333
        %v353 = vsub.s32 %v298, %v337
        %v354 = vsub.s32 %v299, %v333
        %v355 = vsub.s32 %v299, %v337
        %v356 = vsub.s32 %v300, %v333
        %v357 = vsub.s32 %v300, %v337
        %v358 = vsub.s32 %v301, %v333
        %v359 = vsub.s32 %v301, %v337
        %v360 = vsub.s32 %v302, %v333
        %v361 = vsub.s32 %v302, %v337
        %v362 = vsub.s32 %v303, %v333
        %v363 = vsub.s32 %v303, %v337
        %v364 = vsub.s32 %v304, %v333
        %v365 = vsub.s32 %v304, %v337
        %v366 = vsub.s32 %v305, %v333
        %v367 = vsub.s32 %v305, %v337
        %v368 = vsub.s32 %v306, %v333
        %v369 = vsub.s32 %v306, %v337
        %v370 = vsub.s32 %v307, %v333
        %v371 = vsub.s32 %v307, %v337
        %v372 = vsub.s32 %v308, %v333
        %v373 = vsub.s32 %v308, %v337
        %v374 = vsub.s32 %v309, %v333
        %v375 = vsub.s32 %v309, %v337
        %v376 = vsub.s32 %v310, %v333
        %v377 = vsub.s32 %v310, %v337
        %v378 = vsub.s32 %v311, %v333
        %v379 = vsub.s32 %v311, %v337
        %v380 = vsub.s32 %v312, %v333
        %v381 = vsub.s32 %v312, %v337
        %v382 = vsub.s32 %v313, %v333
        %v383 = vsub.s32 %v313, %v337
        %v384 = vsub.s32 %v314, %v333
        %v385 = vsub.s32 %v314, %v337
        %v386 = vsub.s32 %v315, %v333
        %v387 = vsub.s32 %v315, %v337
        %v388 = vsub.s32 %v316, %v333
        %v389 = vsub.s32 %v316, %v337
        %v390 = vsub.s32 %v317, %v333
        %v391 = vsub.s32 %v317, %v337
        %v392 = vsub.s32 %v318, %v333
        %v393 = vsub.s32 %v318, %v337
        %v394 = vsub.s32 %v319, %v333
        %v395 = vsub.s32 %v319, %v337
        %v396 = vsub.s32 %v320, %v333
        %v397 = vsub.s32 %v320, %v337
        %v398 = vsub.s32 %v321, %v333
        %v399 = vsub.s32 %v321, %v337
        %v400 = vsub.s32 %v322, %v333
        %v401 = vsub.s32 %v322, %v337
        %vm402 = vcmp.lt.s32.totalorder %v338, 0
        %v403 = vsub.s32 0, %v338
        %v404 = vsel %vm402, %v403, %v338
        %vm405 = vcmp.lt.s32.totalorder %v339, 0
        %v406 = vsub.s32 0, %v339
        %v407 = vsel %vm405, %v406, %v339
        %vm408 = vcmp.lt.s32.totalorder %v340, 0
        %v409 = vsub.s32 0, %v340
        %v410 = vsel %vm408, %v409, %v340
        %vm411 = vcmp.lt.s32.totalorder %v341, 0
        %v412 = vsub.s32 0, %v341
        %v413 = vsel %vm411, %v412, %v341
        %vm414 = vcmp.lt.s32.totalorder %v342, 0
        %v415 = vsub.s32 0, %v342
        %v416 = vsel %vm414, %v415, %v342
        %vm417 = vcmp.lt.s32.totalorder %v343, 0
        %v418 = vsub.s32 0, %v343
        %v419 = vsel %vm417, %v418, %v343
        %vm420 = vcmp.lt.s32.totalorder %v344, 0
        %v421 = vsub.s32 0, %v344
        %v422 = vsel %vm420, %v421, %v344
        %vm423 = vcmp.lt.s32.totalorder %v345, 0
        %v424 = vsub.s32 0, %v345
        %v425 = vsel %vm423, %v424, %v345
        %vm426 = vcmp.lt.s32.totalorder %v346, 0
        %v427 = vsub.s32 0, %v346
        %v428 = vsel %vm426, %v427, %v346
        %vm429 = vcmp.lt.s32.totalorder %v347, 0
        %v430 = vsub.s32 0, %v347
        %v431 = vsel %vm429, %v430, %v347
        %vm432 = vcmp.lt.s32.totalorder %v348, 0
        %v433 = vsub.s32 0, %v348
        %v434 = vsel %vm432, %v433, %v348
        %vm435 = vcmp.lt.s32.totalorder %v349, 0
        %v436 = vsub.s32 0, %v349
        %v437 = vsel %vm435, %v436, %v349
        %vm438 = vcmp.lt.s32.totalorder %v350, 0
        %v439 = vsub.s32 0, %v350
        %v440 = vsel %vm438, %v439, %v350
        %vm441 = vcmp.lt.s32.totalorder %v351, 0
        %v442 = vsub.s32 0, %v351
        %v443 = vsel %vm441, %v442, %v351
        %vm444 = vcmp.lt.s32.totalorder %v352, 0
        %v445 = vsub.s32 0, %v352
        %v446 = vsel %vm444, %v445, %v352
        %vm447 = vcmp.lt.s32.totalorder %v353, 0
        %v448 = vsub.s32 0, %v353
        %v449 = vsel %vm447, %v448, %v353
        %vm450 = vcmp.lt.s32.totalorder %v354, 0
        %v451 = vsub.s32 0, %v354
        %v452 = vsel %vm450, %v451, %v354
        %vm453 = vcmp.lt.s32.totalorder %v355, 0
        %v454 = vsub.s32 0, %v355
        %v455 = vsel %vm453, %v454, %v355
        %vm456 = vcmp.lt.s32.totalorder %v356, 0
        %v457 = vsub.s32 0, %v356
        %v458 = vsel %vm456, %v457, %v356
        %vm459 = vcmp.lt.s32.totalorder %v357, 0
        %v460 = vsub.s32 0, %v357
        %v461 = vsel %vm459, %v460, %v357
        %vm462 = vcmp.lt.s32.totalorder %v358, 0
        %v463 = vsub.s32 0, %v358
        %v464 = vsel %vm462, %v463, %v358
        %vm465 = vcmp.lt.s32.totalorder %v359, 0
        %v466 = vsub.s32 0, %v359
        %v467 = vsel %vm465, %v466, %v359
        %vm468 = vcmp.lt.s32.totalorder %v360, 0
        %v469 = vsub.s32 0, %v360
        %v470 = vsel %vm468, %v469, %v360
        %vm471 = vcmp.lt.s32.totalorder %v361, 0
        %v472 = vsub.s32 0, %v361
        %v473 = vsel %vm471, %v472, %v361
        %vm474 = vcmp.lt.s32.totalorder %v362, 0
        %v475 = vsub.s32 0, %v362
        %v476 = vsel %vm474, %v475, %v362
        %vm477 = vcmp.lt.s32.totalorder %v363, 0
        %v478 = vsub.s32 0, %v363
        %v479 = vsel %vm477, %v478, %v363
        %vm480 = vcmp.lt.s32.totalorder %v364, 0
        %v481 = vsub.s32 0, %v364
        %v482 = vsel %vm480, %v481, %v364
        %vm483 = vcmp.lt.s32.totalorder %v365, 0
        %v484 = vsub.s32 0, %v365
        %v485 = vsel %vm483, %v484, %v365
        %vm486 = vcmp.lt.s32.totalorder %v366, 0
        %v487 = vsub.s32 0, %v366
        %v488 = vsel %vm486, %v487, %v366
        %vm489 = vcmp.lt.s32.totalorder %v367, 0
        %v490 = vsub.s32 0, %v367
        %v491 = vsel %vm489, %v490, %v367
        %vm492 = vcmp.lt.s32.totalorder %v368, 0
        %v493 = vsub.s32 0, %v368
        %v494 = vsel %vm492, %v493, %v368
        %vm495 = vcmp.lt.s32.totalorder %v369, 0
        %v496 = vsub.s32 0, %v369
        %v497 = vsel %vm495, %v496, %v369
        %vm498 = vcmp.lt.s32.totalorder %v370, 0
        %v499 = vsub.s32 0, %v370
        %v500 = vsel %vm498, %v499, %v370
        %vm501 = vcmp.lt.s32.totalorder %v371, 0
        %v502 = vsub.s32 0, %v371
        %v503 = vsel %vm501, %v502, %v371
        %vm504 = vcmp.lt.s32.totalorder %v372, 0
        %v505 = vsub.s32 0, %v372
        %v506 = vsel %vm504, %v505, %v372
        %vm507 = vcmp.lt.s32.totalorder %v373, 0
        %v508 = vsub.s32 0, %v373
        %v509 = vsel %vm507, %v508, %v373
        %vm510 = vcmp.lt.s32.totalorder %v374, 0
        %v511 = vsub.s32 0, %v374
        %v512 = vsel %vm510, %v511, %v374
        %vm513 = vcmp.lt.s32.totalorder %v375, 0
        %v514 = vsub.s32 0, %v375
        %v515 = vsel %vm513, %v514, %v375
        %vm516 = vcmp.lt.s32.totalorder %v376, 0
        %v517 = vsub.s32 0, %v376
        %v518 = vsel %vm516, %v517, %v376
        %vm519 = vcmp.lt.s32.totalorder %v377, 0
        %v520 = vsub.s32 0, %v377
        %v521 = vsel %vm519, %v520, %v377
        %vm522 = vcmp.lt.s32.totalorder %v378, 0
        %v523 = vsub.s32 0, %v378
        %v524 = vsel %vm522, %v523, %v378
        %vm525 = vcmp.lt.s32.totalorder %v379, 0
        %v526 = vsub.s32 0, %v379
        %v527 = vsel %vm525, %v526, %v379
        %vm528 = vcmp.lt.s32.totalorder %v380, 0
        %v529 = vsub.s32 0, %v380
        %v530 = vsel %vm528, %v529, %v380
        %vm531 = vcmp.lt.s32.totalorder %v381, 0
        %v532 = vsub.s32 0, %v381
        %v533 = vsel %vm531, %v532, %v381
        %vm534 = vcmp.lt.s32.totalorder %v382, 0
        %v535 = vsub.s32 0, %v382
        %v536 = vsel %vm534, %v535, %v382
        %vm537 = vcmp.lt.s32.totalorder %v383, 0
        %v538 = vsub.s32 0, %v383
        %v539 = vsel %vm537, %v538, %v383
        %vm540 = vcmp.lt.s32.totalorder %v384, 0
        %v541 = vsub.s32 0, %v384
        %v542 = vsel %vm540, %v541, %v384
        %vm543 = vcmp.lt.s32.totalorder %v385, 0
        %v544 = vsub.s32 0, %v385
        %v545 = vsel %vm543, %v544, %v385
        %vm546 = vcmp.lt.s32.totalorder %v386, 0
        %v547 = vsub.s32 0, %v386
        %v548 = vsel %vm546, %v547, %v386
        %vm549 = vcmp.lt.s32.totalorder %v387, 0
        %v550 = vsub.s32 0, %v387
        %v551 = vsel %vm549, %v550, %v387
        %vm552 = vcmp.lt.s32.totalorder %v388, 0
        %v553 = vsub.s32 0, %v388
        %v554 = vsel %vm552, %v553, %v388
        %vm555 = vcmp.lt.s32.totalorder %v389, 0
        %v556 = vsub.s32 0, %v389
        %v557 = vsel %vm555, %v556, %v389
        %vm558 = vcmp.lt.s32.totalorder %v390, 0
        %v559 = vsub.s32 0, %v390
        %v560 = vsel %vm558, %v559, %v390
        %vm561 = vcmp.lt.s32.totalorder %v391, 0
        %v562 = vsub.s32 0, %v391
        %v563 = vsel %vm561, %v562, %v391
        %vm564 = vcmp.lt.s32.totalorder %v392, 0
        %v565 = vsub.s32 0, %v392
        %v566 = vsel %vm564, %v565, %v392
        %vm567 = vcmp.lt.s32.totalorder %v393, 0
        %v568 = vsub.s32 0, %v393
        %v569 = vsel %vm567, %v568, %v393
        %vm570 = vcmp.lt.s32.totalorder %v394, 0
        %v571 = vsub.s32 0, %v394
        %v572 = vsel %vm570, %v571, %v394
        %vm573 = vcmp.lt.s32.totalorder %v395, 0
        %v574 = vsub.s32 0, %v395
        %v575 = vsel %vm573, %v574, %v395
        %vm576 = vcmp.lt.s32.totalorder %v396, 0
        %v577 = vsub.s32 0, %v396
        %v578 = vsel %vm576, %v577, %v396
        %vm579 = vcmp.lt.s32.totalorder %v397, 0
        %v580 = vsub.s32 0, %v397
        %v581 = vsel %vm579, %v580, %v397
        %vm582 = vcmp.lt.s32.totalorder %v398, 0
        %v583 = vsub.s32 0, %v398
        %v584 = vsel %vm582, %v583, %v398
        %vm585 = vcmp.lt.s32.totalorder %v399, 0
        %v586 = vsub.s32 0, %v399
        %v587 = vsel %vm585, %v586, %v399
        %vm588 = vcmp.lt.s32.totalorder %v400, 0
        %v589 = vsub.s32 0, %v400
        %v590 = vsel %vm588, %v589, %v400
        %vm591 = vcmp.lt.s32.totalorder %v401, 0
        %v592 = vsub.s32 0, %v401
        %v593 = vsel %vm591, %v592, %v401
        %vm594 = vcmp.le.s32.totalorder %v404, 2
        %vm595 = vcmp.le.s32.totalorder %v407, 2
        %vm596 = vcmp.le.s32.totalorder %v410, 2
        %vm597 = vcmp.le.s32.totalorder %v413, 2
        %vm598 = vcmp.le.s32.totalorder %v416, 2
        %vm599 = vcmp.le.s32.totalorder %v419, 2
        %vm600 = vcmp.le.s32.totalorder %v422, 2
        %vm601 = vcmp.le.s32.totalorder %v425, 2
        %vm602 = vcmp.le.s32.totalorder %v428, 2
        %vm603 = vcmp.le.s32.totalorder %v431, 2
        %vm604 = vcmp.le.s32.totalorder %v434, 2
        %vm605 = vcmp.le.s32.totalorder %v437, 2
        %vm606 = vcmp.le.s32.totalorder %v440, 2
        %vm607 = vcmp.le.s32.totalorder %v443, 2
        %vm608 = vcmp.le.s32.totalorder %v446, 2
        %vm609 = vcmp.le.s32.totalorder %v449, 2
        %vm610 = vcmp.le.s32.totalorder %v452, 2
        %vm611 = vcmp.le.s32.totalorder %v455, 2
        %vm612 = vcmp.le.s32.totalorder %v458, 2
        %vm613 = vcmp.le.s32.totalorder %v461, 2
        %vm614 = vcmp.le.s32.totalorder %v464, 2
        %vm615 = vcmp.le.s32.totalorder %v467, 2
        %vm616 = vcmp.le.s32.totalorder %v470, 2
        %vm617 = vcmp.le.s32.totalorder %v473, 2
        %vm618 = vcmp.le.s32.totalorder %v476, 2
        %vm619 = vcmp.le.s32.totalorder %v479, 2
        %vm620 = vcmp.le.s32.totalorder %v482, 2
        %vm621 = vcmp.le.s32.totalorder %v485, 2
        %vm622 = vcmp.le.s32.totalorder %v488, 2
        %vm623 = vcmp.le.s32.totalorder %v491, 2
        %vm624 = vcmp.le.s32.totalorder %v494, 2
        %vm625 = vcmp.le.s32.totalorder %v497, 2
        %vm626 = vcmp.le.s32.totalorder %v500, 2
        %vm627 = vcmp.le.s32.totalorder %v503, 2
        %vm628 = vcmp.le.s32.totalorder %v506, 2
        %vm629 = vcmp.le.s32.totalorder %v509, 2
        %vm630 = vcmp.le.s32.totalorder %v512, 2
        %vm631 = vcmp.le.s32.totalorder %v515, 2
        %vm632 = vcmp.le.s32.totalorder %v518, 2
        %vm633 = vcmp.le.s32.totalorder %v521, 2
        %vm634 = vcmp.le.s32.totalorder %v524, 2
        %vm635 = vcmp.le.s32.totalorder %v527, 2
        %vm636 = vcmp.le.s32.totalorder %v530, 2
        %vm637 = vcmp.le.s32.totalorder %v533, 2
        %vm638 = vcmp.le.s32.totalorder %v536, 2
        %vm639 = vcmp.le.s32.totalorder %v539, 2
        %vm640 = vcmp.le.s32.totalorder %v542, 2
        %vm641 = vcmp.le.s32.totalorder %v545, 2
        %vm642 = vcmp.le.s32.totalorder %v548, 2
        %vm643 = vcmp.le.s32.totalorder %v551, 2
        %vm644 = vcmp.le.s32.totalorder %v554, 2
        %vm645 = vcmp.le.s32.totalorder %v557, 2
        %vm646 = vcmp.le.s32.totalorder %v560, 2
        %vm647 = vcmp.le.s32.totalorder %v563, 2
        %vm648 = vcmp.le.s32.totalorder %v566, 2
        %vm649 = vcmp.le.s32.totalorder %v569, 2
        %vm650 = vcmp.le.s32.totalorder %v572, 2
        %vm651 = vcmp.le.s32.totalorder %v575, 2
        %vm652 = vcmp.le.s32.totalorder %v578, 2
        %vm653 = vcmp.le.s32.totalorder %v581, 2
        %vm654 = vcmp.le.s32.totalorder %v584, 2
        %vm655 = vcmp.le.s32.totalorder %v587, 2
        %vm656 = vcmp.le.s32.totalorder %v590, 2
        %vm657 = vcmp.le.s32.totalorder %v593, 2
        %v658 = vsel %vm594, 1, 0
        %v659 = vsel %vm595, 1, 0
        %v660 = vsel %vm596, 1, 0
        %v661 = vsel %vm597, 1, 0
        %v662 = vsel %vm598, 1, 0
        %v663 = vsel %vm599, 1, 0
        %v664 = vsel %vm600, 1, 0
        %v665 = vsel %vm601, 1, 0
        %v666 = vsel %vm602, 1, 0
        %v667 = vsel %vm603, 1, 0
        %v668 = vsel %vm604, 1, 0
        %v669 = vsel %vm605, 1, 0
        %v670 = vsel %vm606, 1, 0
        %v671 = vsel %vm607, 1, 0
        %v672 = vsel %vm608, 1, 0
        %v673 = vsel %vm609, 1, 0
        %v674 = vsel %vm610, 1, 0
        %v675 = vsel %vm611, 1, 0
        %v676 = vsel %vm612, 1, 0
        %v677 = vsel %vm613, 1, 0
        %v678 = vsel %vm614, 1, 0
        %v679 = vsel %vm615, 1, 0
        %v680 = vsel %vm616, 1, 0
        %v681 = vsel %vm617, 1, 0
        %v682 = vsel %vm618, 1, 0
        %v683 = vsel %vm619, 1, 0
        %v684 = vsel %vm620, 1, 0
        %v685 = vsel %vm621, 1, 0
        %v686 = vsel %vm622, 1, 0
        %v687 = vsel %vm623, 1, 0
        %v688 = vsel %vm624, 1, 0
        %v689 = vsel %vm625, 1, 0
        %v690 = vsel %vm626, 1, 0
        %v691 = vsel %vm627, 1, 0
        %v692 = vsel %vm628, 1, 0
        %v693 = vsel %vm629, 1, 0
        %v694 = vsel %vm630, 1, 0
        %v695 = vsel %vm631, 1, 0
        %v696 = vsel %vm632, 1, 0
        %v697 = vsel %vm633, 1, 0
        %v698 = vsel %vm634, 1, 0
        %v699 = vsel %vm635, 1, 0
        %v700 = vsel %vm636, 1, 0
        %v701 = vsel %vm637, 1, 0
        %v702 = vsel %vm638, 1, 0
        %v703 = vsel %vm639, 1, 0
        %v704 = vsel %vm640, 1, 0
        %v705 = vsel %vm641, 1, 0
        %v706 = vsel %vm642, 1, 0
        %v707 = vsel %vm643, 1, 0
        %v708 = vsel %vm644, 1, 0
        %v709 = vsel %vm645, 1, 0
        %v710 = vsel %vm646, 1, 0
        %v711 = vsel %vm647, 1, 0
        %v712 = vsel %vm648, 1, 0
        %v713 = vsel %vm649, 1, 0
        %v714 = vsel %vm650, 1, 0
        %v715 = vsel %vm651, 1, 0
        %v716 = vsel %vm652, 1, 0
        %v717 = vsel %vm653, 1, 0
        %v718 = vsel %vm654, 1, 0
        %v719 = vsel %vm655, 1, 0
        %v720 = vsel %vm656, 1, 0
        %v721 = vsel %vm657, 1, 0
        %v722 = vcvt.s32.f32 %v658
        %v723 = vcvt.s32.f32 %v659
        %v724 = vcvt.s32.f32 %v660
        %v725 = vcvt.s32.f32 %v661
        %v726 = vcvt.s32.f32 %v662
        %v727 = vcvt.s32.f32 %v663
        %v728 = vcvt.s32.f32 %v664
        %v729 = vcvt.s32.f32 %v665
        %v730 = vcvt.s32.f32 %v666
        %v731 = vcvt.s32.f32 %v667
        %v732 = vcvt.s32.f32 %v668
        %v733 = vcvt.s32.f32 %v669
        %v734 = vcvt.s32.f32 %v670
        %v735 = vcvt.s32.f32 %v671
        %v736 = vcvt.s32.f32 %v672
        %v737 = vcvt.s32.f32 %v673
        %v738 = vcvt.s32.f32 %v674
        %v739 = vcvt.s32.f32 %v675
        %v740 = vcvt.s32.f32 %v676
        %v741 = vcvt.s32.f32 %v677
        %v742 = vcvt.s32.f32 %v678
        %v743 = vcvt.s32.f32 %v679
        %v744 = vcvt.s32.f32 %v680
        %v745 = vcvt.s32.f32 %v681
        %v746 = vcvt.s32.f32 %v682
        %v747 = vcvt.s32.f32 %v683
        %v748 = vcvt.s32.f32 %v684
        %v749 = vcvt.s32.f32 %v685
        %v750 = vcvt.s32.f32 %v686
        %v751 = vcvt.s32.f32 %v687
        %v752 = vcvt.s32.f32 %v688
        %v753 = vcvt.s32.f32 %v689
        %v754 = vcvt.s32.f32 %v690
        %v755 = vcvt.s32.f32 %v691
        %v756 = vcvt.s32.f32 %v692
        %v757 = vcvt.s32.f32 %v693
        %v758 = vcvt.s32.f32 %v694
        %v759 = vcvt.s32.f32 %v695
        %v760 = vcvt.s32.f32 %v696
        %v761 = vcvt.s32.f32 %v697
        %v762 = vcvt.s32.f32 %v698
        %v763 = vcvt.s32.f32 %v699
        %v764 = vcvt.s32.f32 %v700
        %v765 = vcvt.s32.f32 %v701
        %v766 = vcvt.s32.f32 %v702
        %v767 = vcvt.s32.f32 %v703
        %v768 = vcvt.s32.f32 %v704
        %v769 = vcvt.s32.f32 %v705
        %v770 = vcvt.s32.f32 %v706
        %v771 = vcvt.s32.f32 %v707
        %v772 = vcvt.s32.f32 %v708
        %v773 = vcvt.s32.f32 %v709
        %v774 = vcvt.s32.f32 %v710
        %v775 = vcvt.s32.f32 %v711
        %v776 = vcvt.s32.f32 %v712
        %v777 = vcvt.s32.f32 %v713
        %v778 = vcvt.s32.f32 %v714
        %v779 = vcvt.s32.f32 %v715
        %v780 = vcvt.s32.f32 %v716
        %v781 = vcvt.s32.f32 %v717
        %v782 = vcvt.s32.f32 %v718
        %v783 = vcvt.s32.f32 %v719
        %v784 = vcvt.s32.f32 %v720
        %v785 = vcvt.s32.f32 %v721
        %v786 = vpack.c.bf16 %v724, %v722
        %v787 = vpack.c.bf16 %v725, %v723
        %v788 = vpack.c.bf16 %v728, %v726
        %v789 = vpack.c.bf16 %v729, %v727
        %v790 = vpack.c.bf16 %v732, %v730
        %v791 = vpack.c.bf16 %v733, %v731
        %v792 = vpack.c.bf16 %v736, %v734
        %v793 = vpack.c.bf16 %v737, %v735
        %v794 = vpack.c.bf16 %v740, %v738
        %v795 = vpack.c.bf16 %v741, %v739
        %v796 = vpack.c.bf16 %v744, %v742
        %v797 = vpack.c.bf16 %v745, %v743
        %v798 = vpack.c.bf16 %v748, %v746
        %v799 = vpack.c.bf16 %v749, %v747
        %v800 = vpack.c.bf16 %v752, %v750
        %v801 = vpack.c.bf16 %v753, %v751
        %v802 = vpack.c.bf16 %v756, %v754
        %v803 = vpack.c.bf16 %v757, %v755
        %v804 = vpack.c.bf16 %v760, %v758
        %v805 = vpack.c.bf16 %v761, %v759
        %v806 = vpack.c.bf16 %v764, %v762
        %v807 = vpack.c.bf16 %v765, %v763
        %v808 = vpack.c.bf16 %v768, %v766
        %v809 = vpack.c.bf16 %v769, %v767
        %v810 = vpack.c.bf16 %v772, %v770
        %v811 = vpack.c.bf16 %v773, %v771
        %v812 = vpack.c.bf16 %v776, %v774
        %v813 = vpack.c.bf16 %v777, %v775
        %v814 = vpack.c.bf16 %v780, %v778
        %v815 = vpack.c.bf16 %v781, %v779
        %v816 = vpack.c.bf16 %v784, %v782
        %v817 = vpack.c.bf16 %v785, %v783
        %818 = vset.pattern.permute.xlu0 0
        %819 = vperm.xlu0 %818, %v224
        %v820 = vpop.permute.xlu0 %819
        %821 = vset.pattern.permute.xlu0 0
        %822 = vperm.xlu0 %821, %v225
        %v823 = vpop.permute.xlu0 %822
        %824 = vset.pattern.permute.xlu0 0
        %825 = vperm.xlu0 %824, %v226
        %v826 = vpop.permute.xlu0 %825
        %827 = vset.pattern.permute.xlu0 0
        %828 = vperm.xlu0 %827, %v227
        %v829 = vpop.permute.xlu0 %828
        %830 = vset.pattern.permute.xlu0 0
        %831 = vperm.xlu0 %830, %v228
        %v832 = vpop.permute.xlu0 %831
        %833 = vset.pattern.permute.xlu0 0
        %834 = vperm.xlu0 %833, %v229
        %v835 = vpop.permute.xlu0 %834
        %836 = vset.pattern.permute.xlu0 0
        %837 = vperm.xlu0 %836, %v230
        %v838 = vpop.permute.xlu0 %837
        %839 = vset.pattern.permute.xlu0 0
        %840 = vperm.xlu0 %839, %v231
        %v841 = vpop.permute.xlu0 %840
        %842 = vset.pattern.permute.xlu0 0
        %843 = vperm.xlu0 %842, %v232
        %v844 = vpop.permute.xlu0 %843
        %845 = vset.pattern.permute.xlu0 0
        %846 = vperm.xlu0 %845, %v233
        %v847 = vpop.permute.xlu0 %846
        %848 = vset.pattern.permute.xlu0 0
        %849 = vperm.xlu0 %848, %v234
        %v850 = vpop.permute.xlu0 %849
        %851 = vset.pattern.permute.xlu0 0
        %852 = vperm.xlu0 %851, %v235
        %v853 = vpop.permute.xlu0 %852
        %854 = vset.pattern.permute.xlu0 0
        %855 = vperm.xlu0 %854, %v236
        %v856 = vpop.permute.xlu0 %855
        %857 = vset.pattern.permute.xlu0 0
        %858 = vperm.xlu0 %857, %v237
        %v859 = vpop.permute.xlu0 %858
        %860 = vset.pattern.permute.xlu0 0
        %861 = vperm.xlu0 %860, %v238
        %v862 = vpop.permute.xlu0 %861
        %863 = vset.pattern.permute.xlu0 0
        %864 = vperm.xlu0 %863, %v239
        %v865 = vpop.permute.xlu0 %864
        %866 = vset.pattern.permute.xlu0 0
        %867 = vperm.xlu0 %866, %v240
        %v868 = vpop.permute.xlu0 %867
        %869 = vset.pattern.permute.xlu0 0
        %870 = vperm.xlu0 %869, %v241
        %v871 = vpop.permute.xlu0 %870
        %872 = vset.pattern.permute.xlu0 0
        %873 = vperm.xlu0 %872, %v242
        %v874 = vpop.permute.xlu0 %873
        %875 = vset.pattern.permute.xlu0 0
        %876 = vperm.xlu0 %875, %v243
        %v877 = vpop.permute.xlu0 %876
        %878 = vset.pattern.permute.xlu0 0
        %879 = vperm.xlu0 %878, %v244
        %v880 = vpop.permute.xlu0 %879
        %881 = vset.pattern.permute.xlu0 0
        %882 = vperm.xlu0 %881, %v245
        %v883 = vpop.permute.xlu0 %882
        %884 = vset.pattern.permute.xlu0 0
        %885 = vperm.xlu0 %884, %v246
        %v886 = vpop.permute.xlu0 %885
        %887 = vset.pattern.permute.xlu0 0
        %888 = vperm.xlu0 %887, %v247
        %v889 = vpop.permute.xlu0 %888
        %890 = vset.pattern.permute.xlu0 0
        %891 = vperm.xlu0 %890, %v248
        %v892 = vpop.permute.xlu0 %891
        %893 = vset.pattern.permute.xlu0 0
        %894 = vperm.xlu0 %893, %v249
        %v895 = vpop.permute.xlu0 %894
        %896 = vset.pattern.permute.xlu0 0
        %897 = vperm.xlu0 %896, %v250
        %v898 = vpop.permute.xlu0 %897
        %899 = vset.pattern.permute.xlu0 0
        %900 = vperm.xlu0 %899, %v251
        %v901 = vpop.permute.xlu0 %900
        %902 = vset.pattern.permute.xlu0 0
        %903 = vperm.xlu0 %902, %v252
        %v904 = vpop.permute.xlu0 %903
        %905 = vset.pattern.permute.xlu0 0
        %906 = vperm.xlu0 %905, %v253
        %v907 = vpop.permute.xlu0 %906
        %908 = vset.pattern.permute.xlu0 0
        %909 = vperm.xlu0 %908, %v254
        %v910 = vpop.permute.xlu0 %909
        %911 = vset.pattern.permute.xlu0 0
        %912 = vperm.xlu0 %911, %v255
        %v913 = vpop.permute.xlu0 %912
        %v914 = vsub.s32 %v328, %v820
        %v915 = vsub.s32 %v329, %v820
        %v916 = vsub.s32 %v328, %v823
        %v917 = vsub.s32 %v329, %v823
        %v918 = vsub.s32 %v328, %v826
        %v919 = vsub.s32 %v329, %v826
        %v920 = vsub.s32 %v328, %v829
        %v921 = vsub.s32 %v329, %v829
        %v922 = vsub.s32 %v328, %v832
        %v923 = vsub.s32 %v329, %v832
        %v924 = vsub.s32 %v328, %v835
        %v925 = vsub.s32 %v329, %v835
        %v926 = vsub.s32 %v328, %v838
        %v927 = vsub.s32 %v329, %v838
        %v928 = vsub.s32 %v328, %v841
        %v929 = vsub.s32 %v329, %v841
        %v930 = vsub.s32 %v328, %v844
        %v931 = vsub.s32 %v329, %v844
        %v932 = vsub.s32 %v328, %v847
        %v933 = vsub.s32 %v329, %v847
        %v934 = vsub.s32 %v328, %v850
        %v935 = vsub.s32 %v329, %v850
        %v936 = vsub.s32 %v328, %v853
        %v937 = vsub.s32 %v329, %v853
        %v938 = vsub.s32 %v328, %v856
        %v939 = vsub.s32 %v329, %v856
        %v940 = vsub.s32 %v328, %v859
        %v941 = vsub.s32 %v329, %v859
        %v942 = vsub.s32 %v328, %v862
        %v943 = vsub.s32 %v329, %v862
        %v944 = vsub.s32 %v328, %v865
        %v945 = vsub.s32 %v329, %v865
        %v946 = vsub.s32 %v328, %v868
        %v947 = vsub.s32 %v329, %v868
        %v948 = vsub.s32 %v328, %v871
        %v949 = vsub.s32 %v329, %v871
        %v950 = vsub.s32 %v328, %v874
        %v951 = vsub.s32 %v329, %v874
        %v952 = vsub.s32 %v328, %v877
        %v953 = vsub.s32 %v329, %v877
        %v954 = vsub.s32 %v328, %v880
        %v955 = vsub.s32 %v329, %v880
        %v956 = vsub.s32 %v328, %v883
        %v957 = vsub.s32 %v329, %v883
        %v958 = vsub.s32 %v328, %v886
        %v959 = vsub.s32 %v329, %v886
        %v960 = vsub.s32 %v328, %v889
        %v961 = vsub.s32 %v329, %v889
        %v962 = vsub.s32 %v328, %v892
        %v963 = vsub.s32 %v329, %v892
        %v964 = vsub.s32 %v328, %v895
        %v965 = vsub.s32 %v329, %v895
        %v966 = vsub.s32 %v328, %v898
        %v967 = vsub.s32 %v329, %v898
        %v968 = vsub.s32 %v328, %v901
        %v969 = vsub.s32 %v329, %v901
        %v970 = vsub.s32 %v328, %v904
        %v971 = vsub.s32 %v329, %v904
        %v972 = vsub.s32 %v328, %v907
        %v973 = vsub.s32 %v329, %v907
        %v974 = vsub.s32 %v328, %v910
        %v975 = vsub.s32 %v329, %v910
        %v976 = vsub.s32 %v328, %v913
        %v977 = vsub.s32 %v329, %v913
        %vm978 = vcmp.lt.s32.totalorder %v914, 0
        %v979 = vsub.s32 0, %v914
        %v980 = vsel %vm978, %v979, %v914
        %vm981 = vcmp.lt.s32.totalorder %v915, 0
        %v982 = vsub.s32 0, %v915
        %v983 = vsel %vm981, %v982, %v915
        %vm984 = vcmp.lt.s32.totalorder %v916, 0
        %v985 = vsub.s32 0, %v916
        %v986 = vsel %vm984, %v985, %v916
        %vm987 = vcmp.lt.s32.totalorder %v917, 0
        %v988 = vsub.s32 0, %v917
        %v989 = vsel %vm987, %v988, %v917
        %vm990 = vcmp.lt.s32.totalorder %v918, 0
        %v991 = vsub.s32 0, %v918
        %v992 = vsel %vm990, %v991, %v918
        %vm993 = vcmp.lt.s32.totalorder %v919, 0
        %v994 = vsub.s32 0, %v919
        %v995 = vsel %vm993, %v994, %v919
        %vm996 = vcmp.lt.s32.totalorder %v920, 0
        %v997 = vsub.s32 0, %v920
        %v998 = vsel %vm996, %v997, %v920
        %vm999 = vcmp.lt.s32.totalorder %v921, 0
        %v1000 = vsub.s32 0, %v921
        %v1001 = vsel %vm999, %v1000, %v921
        %vm1002 = vcmp.lt.s32.totalorder %v922, 0
        %v1003 = vsub.s32 0, %v922
        %v1004 = vsel %vm1002, %v1003, %v922
        %vm1005 = vcmp.lt.s32.totalorder %v923, 0
        %v1006 = vsub.s32 0, %v923
        %v1007 = vsel %vm1005, %v1006, %v923
        %vm1008 = vcmp.lt.s32.totalorder %v924, 0
        %v1009 = vsub.s32 0, %v924
        %v1010 = vsel %vm1008, %v1009, %v924
        %vm1011 = vcmp.lt.s32.totalorder %v925, 0
        %v1012 = vsub.s32 0, %v925
        %v1013 = vsel %vm1011, %v1012, %v925
        %vm1014 = vcmp.lt.s32.totalorder %v926, 0
        %v1015 = vsub.s32 0, %v926
        %v1016 = vsel %vm1014, %v1015, %v926
        %vm1017 = vcmp.lt.s32.totalorder %v927, 0
        %v1018 = vsub.s32 0, %v927
        %v1019 = vsel %vm1017, %v1018, %v927
        %vm1020 = vcmp.lt.s32.totalorder %v928, 0
        %v1021 = vsub.s32 0, %v928
        %v1022 = vsel %vm1020, %v1021, %v928
        %vm1023 = vcmp.lt.s32.totalorder %v929, 0
        %v1024 = vsub.s32 0, %v929
        %v1025 = vsel %vm1023, %v1024, %v929
        %vm1026 = vcmp.lt.s32.totalorder %v930, 0
        %v1027 = vsub.s32 0, %v930
        %v1028 = vsel %vm1026, %v1027, %v930
        %vm1029 = vcmp.lt.s32.totalorder %v931, 0
        %v1030 = vsub.s32 0, %v931
        %v1031 = vsel %vm1029, %v1030, %v931
        %vm1032 = vcmp.lt.s32.totalorder %v932, 0
        %v1033 = vsub.s32 0, %v932
        %v1034 = vsel %vm1032, %v1033, %v932
        %vm1035 = vcmp.lt.s32.totalorder %v933, 0
        %v1036 = vsub.s32 0, %v933
        %v1037 = vsel %vm1035, %v1036, %v933
        %vm1038 = vcmp.lt.s32.totalorder %v934, 0
        %v1039 = vsub.s32 0, %v934
        %v1040 = vsel %vm1038, %v1039, %v934
        %vm1041 = vcmp.lt.s32.totalorder %v935, 0
        %v1042 = vsub.s32 0, %v935
        %v1043 = vsel %vm1041, %v1042, %v935
        %vm1044 = vcmp.lt.s32.totalorder %v936, 0
        %v1045 = vsub.s32 0, %v936
        %v1046 = vsel %vm1044, %v1045, %v936
        %vm1047 = vcmp.lt.s32.totalorder %v937, 0
        %v1048 = vsub.s32 0, %v937
        %v1049 = vsel %vm1047, %v1048, %v937
        %vm1050 = vcmp.lt.s32.totalorder %v938, 0
        %v1051 = vsub.s32 0, %v938
        %v1052 = vsel %vm1050, %v1051, %v938
        %vm1053 = vcmp.lt.s32.totalorder %v939, 0
        %v1054 = vsub.s32 0, %v939
        %v1055 = vsel %vm1053, %v1054, %v939
        %vm1056 = vcmp.lt.s32.totalorder %v940, 0
        %v1057 = vsub.s32 0, %v940
        %v1058 = vsel %vm1056, %v1057, %v940
        %vm1059 = vcmp.lt.s32.totalorder %v941, 0
        %v1060 = vsub.s32 0, %v941
        %v1061 = vsel %vm1059, %v1060, %v941
        %vm1062 = vcmp.lt.s32.totalorder %v942, 0
        %v1063 = vsub.s32 0, %v942
        %v1064 = vsel %vm1062, %v1063, %v942
        %vm1065 = vcmp.lt.s32.totalorder %v943, 0
        %v1066 = vsub.s32 0, %v943
        %v1067 = vsel %vm1065, %v1066, %v943
        %vm1068 = vcmp.lt.s32.totalorder %v944, 0
        %v1069 = vsub.s32 0, %v944
        %v1070 = vsel %vm1068, %v1069, %v944
        %vm1071 = vcmp.lt.s32.totalorder %v945, 0
        %v1072 = vsub.s32 0, %v945
        %v1073 = vsel %vm1071, %v1072, %v945
        %vm1074 = vcmp.lt.s32.totalorder %v946, 0
        %v1075 = vsub.s32 0, %v946
        %v1076 = vsel %vm1074, %v1075, %v946
        %vm1077 = vcmp.lt.s32.totalorder %v947, 0
        %v1078 = vsub.s32 0, %v947
        %v1079 = vsel %vm1077, %v1078, %v947
        %vm1080 = vcmp.lt.s32.totalorder %v948, 0
        %v1081 = vsub.s32 0, %v948
        %v1082 = vsel %vm1080, %v1081, %v948
        %vm1083 = vcmp.lt.s32.totalorder %v949, 0
        %v1084 = vsub.s32 0, %v949
        %v1085 = vsel %vm1083, %v1084, %v949
        %vm1086 = vcmp.lt.s32.totalorder %v950, 0
        %v1087 = vsub.s32 0, %v950
        %v1088 = vsel %vm1086, %v1087, %v950
        %vm1089 = vcmp.lt.s32.totalorder %v951, 0
        %v1090 = vsub.s32 0, %v951
        %v1091 = vsel %vm1089, %v1090, %v951
        %vm1092 = vcmp.lt.s32.totalorder %v952, 0
        %v1093 = vsub.s32 0, %v952
        %v1094 = vsel %vm1092, %v1093, %v952
        %vm1095 = vcmp.lt.s32.totalorder %v953, 0
        %v1096 = vsub.s32 0, %v953
        %v1097 = vsel %vm1095, %v1096, %v953
        %vm1098 = vcmp.lt.s32.totalorder %v954, 0
        %v1099 = vsub.s32 0, %v954
        %v1100 = vsel %vm1098, %v1099, %v954
        %vm1101 = vcmp.lt.s32.totalorder %v955, 0
        %v1102 = vsub.s32 0, %v955
        %v1103 = vsel %vm1101, %v1102, %v955
        %vm1104 = vcmp.lt.s32.totalorder %v956, 0
        %v1105 = vsub.s32 0, %v956
        %v1106 = vsel %vm1104, %v1105, %v956
        %vm1107 = vcmp.lt.s32.totalorder %v957, 0
        %v1108 = vsub.s32 0, %v957
        %v1109 = vsel %vm1107, %v1108, %v957
        %vm1110 = vcmp.lt.s32.totalorder %v958, 0
        %v1111 = vsub.s32 0, %v958
        %v1112 = vsel %vm1110, %v1111, %v958
        %vm1113 = vcmp.lt.s32.totalorder %v959, 0
        %v1114 = vsub.s32 0, %v959
        %v1115 = vsel %vm1113, %v1114, %v959
        %vm1116 = vcmp.lt.s32.totalorder %v960, 0
        %v1117 = vsub.s32 0, %v960
        %v1118 = vsel %vm1116, %v1117, %v960
        %vm1119 = vcmp.lt.s32.totalorder %v961, 0
        %v1120 = vsub.s32 0, %v961
        %v1121 = vsel %vm1119, %v1120, %v961
        %vm1122 = vcmp.lt.s32.totalorder %v962, 0
        %v1123 = vsub.s32 0, %v962
        %v1124 = vsel %vm1122, %v1123, %v962
        %vm1125 = vcmp.lt.s32.totalorder %v963, 0
        %v1126 = vsub.s32 0, %v963
        %v1127 = vsel %vm1125, %v1126, %v963
        %vm1128 = vcmp.lt.s32.totalorder %v964, 0
        %v1129 = vsub.s32 0, %v964
        %v1130 = vsel %vm1128, %v1129, %v964
        %vm1131 = vcmp.lt.s32.totalorder %v965, 0
        %v1132 = vsub.s32 0, %v965
        %v1133 = vsel %vm1131, %v1132, %v965
        %vm1134 = vcmp.lt.s32.totalorder %v966, 0
        %v1135 = vsub.s32 0, %v966
        %v1136 = vsel %vm1134, %v1135, %v966
        %vm1137 = vcmp.lt.s32.totalorder %v967, 0
        %v1138 = vsub.s32 0, %v967
        %v1139 = vsel %vm1137, %v1138, %v967
        %vm1140 = vcmp.lt.s32.totalorder %v968, 0
        %v1141 = vsub.s32 0, %v968
        %v1142 = vsel %vm1140, %v1141, %v968
        %vm1143 = vcmp.lt.s32.totalorder %v969, 0
        %v1144 = vsub.s32 0, %v969
        %v1145 = vsel %vm1143, %v1144, %v969
        %vm1146 = vcmp.lt.s32.totalorder %v970, 0
        %v1147 = vsub.s32 0, %v970
        %v1148 = vsel %vm1146, %v1147, %v970
        %vm1149 = vcmp.lt.s32.totalorder %v971, 0
        %v1150 = vsub.s32 0, %v971
        %v1151 = vsel %vm1149, %v1150, %v971
        %vm1152 = vcmp.lt.s32.totalorder %v972, 0
        %v1153 = vsub.s32 0, %v972
        %v1154 = vsel %vm1152, %v1153, %v972
        %vm1155 = vcmp.lt.s32.totalorder %v973, 0
        %v1156 = vsub.s32 0, %v973
        %v1157 = vsel %vm1155, %v1156, %v973
        %vm1158 = vcmp.lt.s32.totalorder %v974, 0
        %v1159 = vsub.s32 0, %v974
        %v1160 = vsel %vm1158, %v1159, %v974
        %vm1161 = vcmp.lt.s32.totalorder %v975, 0
        %v1162 = vsub.s32 0, %v975
        %v1163 = vsel %vm1161, %v1162, %v975
        %vm1164 = vcmp.lt.s32.totalorder %v976, 0
        %v1165 = vsub.s32 0, %v976
        %v1166 = vsel %vm1164, %v1165, %v976
        %vm1167 = vcmp.lt.s32.totalorder %v977, 0
        %v1168 = vsub.s32 0, %v977
        %v1169 = vsel %vm1167, %v1168, %v977
        %vm1170 = vcmp.le.s32.totalorder %v980, 2
        %vm1171 = vcmp.le.s32.totalorder %v983, 2
        %vm1172 = vcmp.le.s32.totalorder %v986, 2
        %vm1173 = vcmp.le.s32.totalorder %v989, 2
        %vm1174 = vcmp.le.s32.totalorder %v992, 2
        %vm1175 = vcmp.le.s32.totalorder %v995, 2
        %vm1176 = vcmp.le.s32.totalorder %v998, 2
        %vm1177 = vcmp.le.s32.totalorder %v1001, 2
        %vm1178 = vcmp.le.s32.totalorder %v1004, 2
        %vm1179 = vcmp.le.s32.totalorder %v1007, 2
        %vm1180 = vcmp.le.s32.totalorder %v1010, 2
        %vm1181 = vcmp.le.s32.totalorder %v1013, 2
        %vm1182 = vcmp.le.s32.totalorder %v1016, 2
        %vm1183 = vcmp.le.s32.totalorder %v1019, 2
        %vm1184 = vcmp.le.s32.totalorder %v1022, 2
        %vm1185 = vcmp.le.s32.totalorder %v1025, 2
        %vm1186 = vcmp.le.s32.totalorder %v1028, 2
        %vm1187 = vcmp.le.s32.totalorder %v1031, 2
        %vm1188 = vcmp.le.s32.totalorder %v1034, 2
        %vm1189 = vcmp.le.s32.totalorder %v1037, 2
        %vm1190 = vcmp.le.s32.totalorder %v1040, 2
        %vm1191 = vcmp.le.s32.totalorder %v1043, 2
        %vm1192 = vcmp.le.s32.totalorder %v1046, 2
        %vm1193 = vcmp.le.s32.totalorder %v1049, 2
        %vm1194 = vcmp.le.s32.totalorder %v1052, 2
        %vm1195 = vcmp.le.s32.totalorder %v1055, 2
        %vm1196 = vcmp.le.s32.totalorder %v1058, 2
        %vm1197 = vcmp.le.s32.totalorder %v1061, 2
        %vm1198 = vcmp.le.s32.totalorder %v1064, 2
        %vm1199 = vcmp.le.s32.totalorder %v1067, 2
        %vm1200 = vcmp.le.s32.totalorder %v1070, 2
        %vm1201 = vcmp.le.s32.totalorder %v1073, 2
        %vm1202 = vcmp.le.s32.totalorder %v1076, 2
        %vm1203 = vcmp.le.s32.totalorder %v1079, 2
        %vm1204 = vcmp.le.s32.totalorder %v1082, 2
        %vm1205 = vcmp.le.s32.totalorder %v1085, 2
        %vm1206 = vcmp.le.s32.totalorder %v1088, 2
        %vm1207 = vcmp.le.s32.totalorder %v1091, 2
        %vm1208 = vcmp.le.s32.totalorder %v1094, 2
        %vm1209 = vcmp.le.s32.totalorder %v1097, 2
        %vm1210 = vcmp.le.s32.totalorder %v1100, 2
        %vm1211 = vcmp.le.s32.totalorder %v1103, 2
        %vm1212 = vcmp.le.s32.totalorder %v1106, 2
        %vm1213 = vcmp.le.s32.totalorder %v1109, 2
        %vm1214 = vcmp.le.s32.totalorder %v1112, 2
        %vm1215 = vcmp.le.s32.totalorder %v1115, 2
        %vm1216 = vcmp.le.s32.totalorder %v1118, 2
        %vm1217 = vcmp.le.s32.totalorder %v1121, 2
        %vm1218 = vcmp.le.s32.totalorder %v1124, 2
        %vm1219 = vcmp.le.s32.totalorder %v1127, 2
        %vm1220 = vcmp.le.s32.totalorder %v1130, 2
        %vm1221 = vcmp.le.s32.totalorder %v1133, 2
        %vm1222 = vcmp.le.s32.totalorder %v1136, 2
        %vm1223 = vcmp.le.s32.totalorder %v1139, 2
        %vm1224 = vcmp.le.s32.totalorder %v1142, 2
        %vm1225 = vcmp.le.s32.totalorder %v1145, 2
        %vm1226 = vcmp.le.s32.totalorder %v1148, 2
        %vm1227 = vcmp.le.s32.totalorder %v1151, 2
        %vm1228 = vcmp.le.s32.totalorder %v1154, 2
        %vm1229 = vcmp.le.s32.totalorder %v1157, 2
        %vm1230 = vcmp.le.s32.totalorder %v1160, 2
        %vm1231 = vcmp.le.s32.totalorder %v1163, 2
        %vm1232 = vcmp.le.s32.totalorder %v1166, 2
        %vm1233 = vcmp.le.s32.totalorder %v1169, 2
        %v1234 = vsel %vm1170, 1, 0
        %v1235 = vsel %vm1171, 1, 0
        %v1236 = vsel %vm1172, 1, 0
        %v1237 = vsel %vm1173, 1, 0
        %v1238 = vsel %vm1174, 1, 0
        %v1239 = vsel %vm1175, 1, 0
        %v1240 = vsel %vm1176, 1, 0
        %v1241 = vsel %vm1177, 1, 0
        %v1242 = vsel %vm1178, 1, 0
        %v1243 = vsel %vm1179, 1, 0
        %v1244 = vsel %vm1180, 1, 0
        %v1245 = vsel %vm1181, 1, 0
        %v1246 = vsel %vm1182, 1, 0
        %v1247 = vsel %vm1183, 1, 0
        %v1248 = vsel %vm1184, 1, 0
        %v1249 = vsel %vm1185, 1, 0
        %v1250 = vsel %vm1186, 1, 0
        %v1251 = vsel %vm1187, 1, 0
        %v1252 = vsel %vm1188, 1, 0
        %v1253 = vsel %vm1189, 1, 0
        %v1254 = vsel %vm1190, 1, 0
        %v1255 = vsel %vm1191, 1, 0
        %v1256 = vsel %vm1192, 1, 0
        %v1257 = vsel %vm1193, 1, 0
        %v1258 = vsel %vm1194, 1, 0
        %v1259 = vsel %vm1195, 1, 0
        %v1260 = vsel %vm1196, 1, 0
        %v1261 = vsel %vm1197, 1, 0
        %v1262 = vsel %vm1198, 1, 0
        %v1263 = vsel %vm1199, 1, 0
        %v1264 = vsel %vm1200, 1, 0
        %v1265 = vsel %vm1201, 1, 0
        %v1266 = vsel %vm1202, 1, 0
        %v1267 = vsel %vm1203, 1, 0
        %v1268 = vsel %vm1204, 1, 0
        %v1269 = vsel %vm1205, 1, 0
        %v1270 = vsel %vm1206, 1, 0
        %v1271 = vsel %vm1207, 1, 0
        %v1272 = vsel %vm1208, 1, 0
        %v1273 = vsel %vm1209, 1, 0
        %v1274 = vsel %vm1210, 1, 0
        %v1275 = vsel %vm1211, 1, 0
        %v1276 = vsel %vm1212, 1, 0
        %v1277 = vsel %vm1213, 1, 0
        %v1278 = vsel %vm1214, 1, 0
        %v1279 = vsel %vm1215, 1, 0
        %v1280 = vsel %vm1216, 1, 0
        %v1281 = vsel %vm1217, 1, 0
        %v1282 = vsel %vm1218, 1, 0
        %v1283 = vsel %vm1219, 1, 0
        %v1284 = vsel %vm1220, 1, 0
        %v1285 = vsel %vm1221, 1, 0
        %v1286 = vsel %vm1222, 1, 0
        %v1287 = vsel %vm1223, 1, 0
        %v1288 = vsel %vm1224, 1, 0
        %v1289 = vsel %vm1225, 1, 0
        %v1290 = vsel %vm1226, 1, 0
        %v1291 = vsel %vm1227, 1, 0
        %v1292 = vsel %vm1228, 1, 0
        %v1293 = vsel %vm1229, 1, 0
        %v1294 = vsel %vm1230, 1, 0
        %v1295 = vsel %vm1231, 1, 0
        %v1296 = vsel %vm1232, 1, 0
        %v1297 = vsel %vm1233, 1, 0
        %v1298 = vcvt.s32.f32 %v1234
        %v1299 = vcvt.s32.f32 %v1235
        %v1300 = vcvt.s32.f32 %v1236
        %v1301 = vcvt.s32.f32 %v1237
        %v1302 = vcvt.s32.f32 %v1238
        %v1303 = vcvt.s32.f32 %v1239
        %v1304 = vcvt.s32.f32 %v1240
        %v1305 = vcvt.s32.f32 %v1241
        %v1306 = vcvt.s32.f32 %v1242
        %v1307 = vcvt.s32.f32 %v1243
        %v1308 = vcvt.s32.f32 %v1244
        %v1309 = vcvt.s32.f32 %v1245
        %v1310 = vcvt.s32.f32 %v1246
        %v1311 = vcvt.s32.f32 %v1247
        %v1312 = vcvt.s32.f32 %v1248
        %v1313 = vcvt.s32.f32 %v1249
        %v1314 = vcvt.s32.f32 %v1250
        %v1315 = vcvt.s32.f32 %v1251
        %v1316 = vcvt.s32.f32 %v1252
        %v1317 = vcvt.s32.f32 %v1253
        %v1318 = vcvt.s32.f32 %v1254
        %v1319 = vcvt.s32.f32 %v1255
        %v1320 = vcvt.s32.f32 %v1256
        %v1321 = vcvt.s32.f32 %v1257
        %v1322 = vcvt.s32.f32 %v1258
        %v1323 = vcvt.s32.f32 %v1259
        %v1324 = vcvt.s32.f32 %v1260
        %v1325 = vcvt.s32.f32 %v1261
        %v1326 = vcvt.s32.f32 %v1262
        %v1327 = vcvt.s32.f32 %v1263
        %v1328 = vcvt.s32.f32 %v1264
        %v1329 = vcvt.s32.f32 %v1265
        %v1330 = vcvt.s32.f32 %v1266
        %v1331 = vcvt.s32.f32 %v1267
        %v1332 = vcvt.s32.f32 %v1268
        %v1333 = vcvt.s32.f32 %v1269
        %v1334 = vcvt.s32.f32 %v1270
        %v1335 = vcvt.s32.f32 %v1271
        %v1336 = vcvt.s32.f32 %v1272
        %v1337 = vcvt.s32.f32 %v1273
        %v1338 = vcvt.s32.f32 %v1274
        %v1339 = vcvt.s32.f32 %v1275
        %v1340 = vcvt.s32.f32 %v1276
        %v1341 = vcvt.s32.f32 %v1277
        %v1342 = vcvt.s32.f32 %v1278
        %v1343 = vcvt.s32.f32 %v1279
        %v1344 = vcvt.s32.f32 %v1280
        %v1345 = vcvt.s32.f32 %v1281
        %v1346 = vcvt.s32.f32 %v1282
        %v1347 = vcvt.s32.f32 %v1283
        %v1348 = vcvt.s32.f32 %v1284
        %v1349 = vcvt.s32.f32 %v1285
        %v1350 = vcvt.s32.f32 %v1286
        %v1351 = vcvt.s32.f32 %v1287
        %v1352 = vcvt.s32.f32 %v1288
        %v1353 = vcvt.s32.f32 %v1289
        %v1354 = vcvt.s32.f32 %v1290
        %v1355 = vcvt.s32.f32 %v1291
        %v1356 = vcvt.s32.f32 %v1292
        %v1357 = vcvt.s32.f32 %v1293
        %v1358 = vcvt.s32.f32 %v1294
        %v1359 = vcvt.s32.f32 %v1295
        %v1360 = vcvt.s32.f32 %v1296
        %v1361 = vcvt.s32.f32 %v1297
        %v1362 = vpack.c.bf16 %v1300, %v1298
        %v1363 = vpack.c.bf16 %v1301, %v1299
        %v1364 = vpack.c.bf16 %v1304, %v1302
        %v1365 = vpack.c.bf16 %v1305, %v1303
        %v1366 = vpack.c.bf16 %v1308, %v1306
        %v1367 = vpack.c.bf16 %v1309, %v1307
        %v1368 = vpack.c.bf16 %v1312, %v1310
        %v1369 = vpack.c.bf16 %v1313, %v1311
        %v1370 = vpack.c.bf16 %v1316, %v1314
        %v1371 = vpack.c.bf16 %v1317, %v1315
        %v1372 = vpack.c.bf16 %v1320, %v1318
        %v1373 = vpack.c.bf16 %v1321, %v1319
        %v1374 = vpack.c.bf16 %v1324, %v1322
        %v1375 = vpack.c.bf16 %v1325, %v1323
        %v1376 = vpack.c.bf16 %v1328, %v1326
        %v1377 = vpack.c.bf16 %v1329, %v1327
        %v1378 = vpack.c.bf16 %v1332, %v1330
        %v1379 = vpack.c.bf16 %v1333, %v1331
        %v1380 = vpack.c.bf16 %v1336, %v1334
        %v1381 = vpack.c.bf16 %v1337, %v1335
        %v1382 = vpack.c.bf16 %v1340, %v1338
        %v1383 = vpack.c.bf16 %v1341, %v1339
        %v1384 = vpack.c.bf16 %v1344, %v1342
        %v1385 = vpack.c.bf16 %v1345, %v1343
        %v1386 = vpack.c.bf16 %v1348, %v1346
        %v1387 = vpack.c.bf16 %v1349, %v1347
        %v1388 = vpack.c.bf16 %v1352, %v1350
        %v1389 = vpack.c.bf16 %v1353, %v1351
        %v1390 = vpack.c.bf16 %v1356, %v1354
        %v1391 = vpack.c.bf16 %v1357, %v1355
        %v1392 = vpack.c.bf16 %v1360, %v1358
        %v1393 = vpack.c.bf16 %v1361, %v1359
        %1394 = vmatprep.subr.bf16.mxu0 %v1363
        %1395 = vmatpush1.bf16.msra.mxu0 %v1362
        %1396 = vmatprep.subr.bf16.mxu0 %v1365
        %1397 = vmatpush1.bf16.msra.mxu0 %v1364
        %1398 = vmatprep.subr.bf16.mxu0 %v1367
        %1399 = vmatpush1.bf16.msra.mxu0 %v1366
        %1400 = vmatprep.subr.bf16.mxu0 %v1369
        %1401 = vmatpush1.bf16.msra.mxu0 %v1368
        %1402 = vmatprep.subr.bf16.mxu0 %v1371
        %1403 = vmatpush1.bf16.msra.mxu0 %v1370
        %1404 = vmatprep.subr.bf16.mxu0 %v1373
        %1405 = vmatpush1.bf16.msra.mxu0 %v1372
        %1406 = vmatprep.subr.bf16.mxu0 %v1375
        %1407 = vmatpush1.bf16.msra.mxu0 %v1374
        %1408 = vmatprep.subr.bf16.mxu0 %v1377
        %1409 = vmatpush1.bf16.msra.mxu0 %v1376
        %1410 = vmatprep.subr.bf16.mxu0 %v1379
        %1411 = vmatpush1.bf16.msra.mxu0 %v1378
        %1412 = vmatprep.subr.bf16.mxu0 %v1381
        %1413 = vmatpush1.bf16.msra.mxu0 %v1380
        %1414 = vmatprep.subr.bf16.mxu0 %v1383
        %1415 = vmatpush1.bf16.msra.mxu0 %v1382
        %1416 = vmatprep.subr.bf16.mxu0 %v1385
        %1417 = vmatpush1.bf16.msra.mxu0 %v1384
        %1418 = vmatprep.subr.bf16.mxu0 %v1387
        %1419 = vmatpush1.bf16.msra.mxu0 %v1386
        %1420 = vmatprep.subr.bf16.mxu0 %v1389
        %1421 = vmatpush1.bf16.msra.mxu0 %v1388
        %1422 = vmatprep.subr.bf16.mxu0 %v1391
        %1423 = vmatpush1.bf16.msra.mxu0 %v1390
        %1424 = vmatprep.subr.bf16.mxu0 %v1393
        %1425 = vmatpush1.bf16.msra.mxu0 %v1392
        %1426 = vmatprep.mubr.bf16.mxu0 %v787
        %1427 = vmatmul.mubr.bf16.gmra.mrb[0].mxu0 %v786
        %v1428 = vpop.f32.mrb[0].mxu0
        %v1429 = vadd.f32 0.0, %v1428
        %v1430 = vpop.f32.mrb[0].mxu0
        %v1431 = vadd.f32 0.0, %v1430
        %v1432 = vpop.f32.mrb[0].mxu0
        %v1433 = vadd.f32 0.0, %v1432
        %v1434 = vpop.f32.mrb[0].mxu0
        %v1435 = vadd.f32 0.0, %v1434
        %1436 = vmatprep.mubr.bf16.mxu0 %v789
        %1437 = vmatmul.mubr.bf16.gmra.mrb[0].mxu0 %v788
        %v1438 = vpop.f32.mrb[0].mxu0
        %v1439 = vadd.f32 0.0, %v1438
        %v1440 = vpop.f32.mrb[0].mxu0
        %v1441 = vadd.f32 0.0, %v1440
        %v1442 = vpop.f32.mrb[0].mxu0
        %v1443 = vadd.f32 0.0, %v1442
        %v1444 = vpop.f32.mrb[0].mxu0
        %v1445 = vadd.f32 0.0, %v1444
        %1446 = vmatprep.mubr.bf16.mxu0 %v791
        %1447 = vmatmul.mubr.bf16.gmra.mrb[0].mxu0 %v790
        %v1448 = vpop.f32.mrb[0].mxu0
        %v1449 = vadd.f32 0.0, %v1448
        %v1450 = vpop.f32.mrb[0].mxu0
        %v1451 = vadd.f32 0.0, %v1450
        %v1452 = vpop.f32.mrb[0].mxu0
        %v1453 = vadd.f32 0.0, %v1452
        %v1454 = vpop.f32.mrb[0].mxu0
        %v1455 = vadd.f32 0.0, %v1454
        %1456 = vmatprep.mubr.bf16.mxu0 %v793
        %1457 = vmatmul.mubr.bf16.gmra.mrb[0].mxu0 %v792
        %v1458 = vpop.f32.mrb[0].mxu0
        %v1459 = vadd.f32 0.0, %v1458
        %v1460 = vpop.f32.mrb[0].mxu0
        %v1461 = vadd.f32 0.0, %v1460
        %v1462 = vpop.f32.mrb[0].mxu0
        %v1463 = vadd.f32 0.0, %v1462
        %v1464 = vpop.f32.mrb[0].mxu0
        %v1465 = vadd.f32 0.0, %v1464
        %1466 = vmatprep.mubr.bf16.mxu0 %v795
        %1467 = vmatmul.mubr.bf16.gmra.mrb[0].mxu0 %v794
        %v1468 = vpop.f32.mrb[0].mxu0
        %v1469 = vadd.f32 0.0, %v1468
        %v1470 = vpop.f32.mrb[0].mxu0
        %v1471 = vadd.f32 0.0, %v1470
        %v1472 = vpop.f32.mrb[0].mxu0
        %v1473 = vadd.f32 0.0, %v1472
        %v1474 = vpop.f32.mrb[0].mxu0
        %v1475 = vadd.f32 0.0, %v1474
        %1476 = vmatprep.mubr.bf16.mxu0 %v797
        %1477 = vmatmul.mubr.bf16.gmra.mrb[0].mxu0 %v796
        %v1478 = vpop.f32.mrb[0].mxu0
        %v1479 = vadd.f32 0.0, %v1478
        %v1480 = vpop.f32.mrb[0].mxu0
        %v1481 = vadd.f32 0.0, %v1480
        %v1482 = vpop.f32.mrb[0].mxu0
        %v1483 = vadd.f32 0.0, %v1482
        %v1484 = vpop.f32.mrb[0].mxu0
        %v1485 = vadd.f32 0.0, %v1484
        %1486 = vmatprep.mubr.bf16.mxu0 %v799
        %1487 = vmatmul.mubr.bf16.gmra.mrb[0].mxu0 %v798
        %v1488 = vpop.f32.mrb[0].mxu0
        %v1489 = vadd.f32 0.0, %v1488
        %v1490 = vpop.f32.mrb[0].mxu0
        %v1491 = vadd.f32 0.0, %v1490
        %v1492 = vpop.f32.mrb[0].mxu0
        %v1493 = vadd.f32 0.0, %v1492
        %v1494 = vpop.f32.mrb[0].mxu0
        %v1495 = vadd.f32 0.0, %v1494
        %1496 = vmatprep.mubr.bf16.mxu0 %v801
        %1497 = vmatmul.mubr.bf16.gmra.mrb[0].mxu0 %v800
        %v1498 = vpop.f32.mrb[0].mxu0
        %v1499 = vadd.f32 0.0, %v1498
        %v1500 = vpop.f32.mrb[0].mxu0
        %v1501 = vadd.f32 0.0, %v1500
        %v1502 = vpop.f32.mrb[0].mxu0
        %v1503 = vadd.f32 0.0, %v1502
        %v1504 = vpop.f32.mrb[0].mxu0
        %v1505 = vadd.f32 0.0, %v1504
        %1506 = vmatprep.mubr.bf16.mxu0 %v803
        %1507 = vmatmul.mubr.bf16.gmra.mrb[0].mxu0 %v802
        %v1508 = vpop.f32.mrb[0].mxu0
        %v1509 = vadd.f32 0.0, %v1508
        %v1510 = vpop.f32.mrb[0].mxu0
        %v1511 = vadd.f32 0.0, %v1510
        %v1512 = vpop.f32.mrb[0].mxu0
        %v1513 = vadd.f32 0.0, %v1512
        %v1514 = vpop.f32.mrb[0].mxu0
        %v1515 = vadd.f32 0.0, %v1514
        %1516 = vmatprep.mubr.bf16.mxu0 %v805
        %1517 = vmatmul.mubr.bf16.gmra.mrb[0].mxu0 %v804
        %v1518 = vpop.f32.mrb[0].mxu0
        %v1519 = vadd.f32 0.0, %v1518
        %v1520 = vpop.f32.mrb[0].mxu0
        %v1521 = vadd.f32 0.0, %v1520
        %v1522 = vpop.f32.mrb[0].mxu0
        %v1523 = vadd.f32 0.0, %v1522
        %v1524 = vpop.f32.mrb[0].mxu0
        %v1525 = vadd.f32 0.0, %v1524
        %1526 = vmatprep.mubr.bf16.mxu0 %v807
        %1527 = vmatmul.mubr.bf16.gmra.mrb[0].mxu0 %v806
        %v1528 = vpop.f32.mrb[0].mxu0
        %v1529 = vadd.f32 0.0, %v1528
        %v1530 = vpop.f32.mrb[0].mxu0
        %v1531 = vadd.f32 0.0, %v1530
        %v1532 = vpop.f32.mrb[0].mxu0
        %v1533 = vadd.f32 0.0, %v1532
        %v1534 = vpop.f32.mrb[0].mxu0
        %v1535 = vadd.f32 0.0, %v1534
        %1536 = vmatprep.mubr.bf16.mxu0 %v809
        %1537 = vmatmul.mubr.bf16.gmra.mrb[0].mxu0 %v808
        %v1538 = vpop.f32.mrb[0].mxu0
        %v1539 = vadd.f32 0.0, %v1538
        %v1540 = vpop.f32.mrb[0].mxu0
        %v1541 = vadd.f32 0.0, %v1540
        %v1542 = vpop.f32.mrb[0].mxu0
        %v1543 = vadd.f32 0.0, %v1542
        %v1544 = vpop.f32.mrb[0].mxu0
        %v1545 = vadd.f32 0.0, %v1544
        %1546 = vmatprep.mubr.bf16.mxu0 %v811
        %1547 = vmatmul.mubr.bf16.gmra.mrb[0].mxu0 %v810
        %v1548 = vpop.f32.mrb[0].mxu0
        %v1549 = vadd.f32 0.0, %v1548
        %v1550 = vpop.f32.mrb[0].mxu0
        %v1551 = vadd.f32 0.0, %v1550
        %v1552 = vpop.f32.mrb[0].mxu0
        %v1553 = vadd.f32 0.0, %v1552
        %v1554 = vpop.f32.mrb[0].mxu0
        %v1555 = vadd.f32 0.0, %v1554
        %1556 = vmatprep.mubr.bf16.mxu0 %v813
        %1557 = vmatmul.mubr.bf16.gmra.mrb[0].mxu0 %v812
        %v1558 = vpop.f32.mrb[0].mxu0
        %v1559 = vadd.f32 0.0, %v1558
        %v1560 = vpop.f32.mrb[0].mxu0
        %v1561 = vadd.f32 0.0, %v1560
        %v1562 = vpop.f32.mrb[0].mxu0
        %v1563 = vadd.f32 0.0, %v1562
        %v1564 = vpop.f32.mrb[0].mxu0
        %v1565 = vadd.f32 0.0, %v1564
        %1566 = vmatprep.mubr.bf16.mxu0 %v815
        %1567 = vmatmul.mubr.bf16.gmra.mrb[0].mxu0 %v814
        %v1568 = vpop.f32.mrb[0].mxu0
        %v1569 = vadd.f32 0.0, %v1568
        %v1570 = vpop.f32.mrb[0].mxu0
        %v1571 = vadd.f32 0.0, %v1570
        %v1572 = vpop.f32.mrb[0].mxu0
        %v1573 = vadd.f32 0.0, %v1572
        %v1574 = vpop.f32.mrb[0].mxu0
        %v1575 = vadd.f32 0.0, %v1574
        %1576 = vmatprep.mubr.bf16.mxu0 %v817
        %1577 = vmatmul.mubr.bf16.gmra.mrb[0].mxu0 %v816
        %v1578 = vpop.f32.mrb[0].mxu0
        %v1579 = vadd.f32 0.0, %v1578
        %v1580 = vpop.f32.mrb[0].mxu0
        %v1581 = vadd.f32 0.0, %v1580
        %v1582 = vpop.f32.mrb[0].mxu0
        %v1583 = vadd.f32 0.0, %v1582
        %v1584 = vpop.f32.mrb[0].mxu0
        %v1585 = vadd.f32 0.0, %v1584
        %1586 = vdwg.mxu0
        %vm1587 = vcmp.gt.f32.partialorder %v1429, 0.5
        %vm1588 = vcmp.gt.f32.partialorder %v1431, 0.5
        %vm1589 = vcmp.gt.f32.partialorder %v1433, 0.5
        %vm1590 = vcmp.gt.f32.partialorder %v1435, 0.5
        %vm1591 = vcmp.gt.f32.partialorder %v1439, 0.5
        %vm1592 = vcmp.gt.f32.partialorder %v1441, 0.5
        %vm1593 = vcmp.gt.f32.partialorder %v1443, 0.5
        %vm1594 = vcmp.gt.f32.partialorder %v1445, 0.5
        %vm1595 = vcmp.gt.f32.partialorder %v1449, 0.5
        %vm1596 = vcmp.gt.f32.partialorder %v1451, 0.5
        %vm1597 = vcmp.gt.f32.partialorder %v1453, 0.5
        %vm1598 = vcmp.gt.f32.partialorder %v1455, 0.5
        %vm1599 = vcmp.gt.f32.partialorder %v1459, 0.5
        %vm1600 = vcmp.gt.f32.partialorder %v1461, 0.5
        %vm1601 = vcmp.gt.f32.partialorder %v1463, 0.5
        %vm1602 = vcmp.gt.f32.partialorder %v1465, 0.5
        %vm1603 = vcmp.gt.f32.partialorder %v1469, 0.5
        %vm1604 = vcmp.gt.f32.partialorder %v1471, 0.5
        %vm1605 = vcmp.gt.f32.partialorder %v1473, 0.5
        %vm1606 = vcmp.gt.f32.partialorder %v1475, 0.5
        %vm1607 = vcmp.gt.f32.partialorder %v1479, 0.5
        %vm1608 = vcmp.gt.f32.partialorder %v1481, 0.5
        %vm1609 = vcmp.gt.f32.partialorder %v1483, 0.5
        %vm1610 = vcmp.gt.f32.partialorder %v1485, 0.5
        %vm1611 = vcmp.gt.f32.partialorder %v1489, 0.5
        %vm1612 = vcmp.gt.f32.partialorder %v1491, 0.5
        %vm1613 = vcmp.gt.f32.partialorder %v1493, 0.5
        %vm1614 = vcmp.gt.f32.partialorder %v1495, 0.5
        %vm1615 = vcmp.gt.f32.partialorder %v1499, 0.5
        %vm1616 = vcmp.gt.f32.partialorder %v1501, 0.5
        %vm1617 = vcmp.gt.f32.partialorder %v1503, 0.5
        %vm1618 = vcmp.gt.f32.partialorder %v1505, 0.5
        %vm1619 = vcmp.gt.f32.partialorder %v1509, 0.5
        %vm1620 = vcmp.gt.f32.partialorder %v1511, 0.5
        %vm1621 = vcmp.gt.f32.partialorder %v1513, 0.5
        %vm1622 = vcmp.gt.f32.partialorder %v1515, 0.5
        %vm1623 = vcmp.gt.f32.partialorder %v1519, 0.5
        %vm1624 = vcmp.gt.f32.partialorder %v1521, 0.5
        %vm1625 = vcmp.gt.f32.partialorder %v1523, 0.5
        %vm1626 = vcmp.gt.f32.partialorder %v1525, 0.5
        %vm1627 = vcmp.gt.f32.partialorder %v1529, 0.5
        %vm1628 = vcmp.gt.f32.partialorder %v1531, 0.5
        %vm1629 = vcmp.gt.f32.partialorder %v1533, 0.5
        %vm1630 = vcmp.gt.f32.partialorder %v1535, 0.5
        %vm1631 = vcmp.gt.f32.partialorder %v1539, 0.5
        %vm1632 = vcmp.gt.f32.partialorder %v1541, 0.5
        %vm1633 = vcmp.gt.f32.partialorder %v1543, 0.5
        %vm1634 = vcmp.gt.f32.partialorder %v1545, 0.5
        %vm1635 = vcmp.gt.f32.partialorder %v1549, 0.5
        %vm1636 = vcmp.gt.f32.partialorder %v1551, 0.5
        %vm1637 = vcmp.gt.f32.partialorder %v1553, 0.5
        %vm1638 = vcmp.gt.f32.partialorder %v1555, 0.5
        %vm1639 = vcmp.gt.f32.partialorder %v1559, 0.5
        %vm1640 = vcmp.gt.f32.partialorder %v1561, 0.5
        %vm1641 = vcmp.gt.f32.partialorder %v1563, 0.5
        %vm1642 = vcmp.gt.f32.partialorder %v1565, 0.5
        %vm1643 = vcmp.gt.f32.partialorder %v1569, 0.5
        %vm1644 = vcmp.gt.f32.partialorder %v1571, 0.5
        %vm1645 = vcmp.gt.f32.partialorder %v1573, 0.5
        %vm1646 = vcmp.gt.f32.partialorder %v1575, 0.5
        %vm1647 = vcmp.gt.f32.partialorder %v1579, 0.5
        %vm1648 = vcmp.gt.f32.partialorder %v1581, 0.5
        %vm1649 = vcmp.gt.f32.partialorder %v1583, 0.5
        %vm1650 = vcmp.gt.f32.partialorder %v1585, 0.5
        %v1651 = vsel %vm1587, 1, 0
        %v1652 = vsel %vm1588, 1, 0
        %v1653 = vsel %vm1589, 1, 0
        %v1654 = vsel %vm1590, 1, 0
        %v1655 = vsel %vm1591, 1, 0
        %v1656 = vsel %vm1592, 1, 0
        %v1657 = vsel %vm1593, 1, 0
        %v1658 = vsel %vm1594, 1, 0
        %v1659 = vsel %vm1595, 1, 0
        %v1660 = vsel %vm1596, 1, 0
        %v1661 = vsel %vm1597, 1, 0
        %v1662 = vsel %vm1598, 1, 0
        %v1663 = vsel %vm1599, 1, 0
        %v1664 = vsel %vm1600, 1, 0
        %v1665 = vsel %vm1601, 1, 0
        %v1666 = vsel %vm1602, 1, 0
        %v1667 = vsel %vm1603, 1, 0
        %v1668 = vsel %vm1604, 1, 0
        %v1669 = vsel %vm1605, 1, 0
        %v1670 = vsel %vm1606, 1, 0
        %v1671 = vsel %vm1607, 1, 0
        %v1672 = vsel %vm1608, 1, 0
        %v1673 = vsel %vm1609, 1, 0
        %v1674 = vsel %vm1610, 1, 0
        %v1675 = vsel %vm1611, 1, 0
        %v1676 = vsel %vm1612, 1, 0
        %v1677 = vsel %vm1613, 1, 0
        %v1678 = vsel %vm1614, 1, 0
        %v1679 = vsel %vm1615, 1, 0
        %v1680 = vsel %vm1616, 1, 0
        %v1681 = vsel %vm1617, 1, 0
        %v1682 = vsel %vm1618, 1, 0
        %v1683 = vsel %vm1619, 1, 0
        %v1684 = vsel %vm1620, 1, 0
        %v1685 = vsel %vm1621, 1, 0
        %v1686 = vsel %vm1622, 1, 0
        %v1687 = vsel %vm1623, 1, 0
        %v1688 = vsel %vm1624, 1, 0
        %v1689 = vsel %vm1625, 1, 0
        %v1690 = vsel %vm1626, 1, 0
        %v1691 = vsel %vm1627, 1, 0
        %v1692 = vsel %vm1628, 1, 0
        %v1693 = vsel %vm1629, 1, 0
        %v1694 = vsel %vm1630, 1, 0
        %v1695 = vsel %vm1631, 1, 0
        %v1696 = vsel %vm1632, 1, 0
        %v1697 = vsel %vm1633, 1, 0
        %v1698 = vsel %vm1634, 1, 0
        %v1699 = vsel %vm1635, 1, 0
        %v1700 = vsel %vm1636, 1, 0
        %v1701 = vsel %vm1637, 1, 0
        %v1702 = vsel %vm1638, 1, 0
        %v1703 = vsel %vm1639, 1, 0
        %v1704 = vsel %vm1640, 1, 0
        %v1705 = vsel %vm1641, 1, 0
        %v1706 = vsel %vm1642, 1, 0
        %v1707 = vsel %vm1643, 1, 0
        %v1708 = vsel %vm1644, 1, 0
        %v1709 = vsel %vm1645, 1, 0
        %v1710 = vsel %vm1646, 1, 0
        %v1711 = vsel %vm1647, 1, 0
        %v1712 = vsel %vm1648, 1, 0
        %v1713 = vsel %vm1649, 1, 0
        %v1714 = vsel %vm1650, 1, 0
        %v1715 = vcvt.s32.f32 %v1651
        %v1716 = vcvt.s32.f32 %v1652
        %v1717 = vcvt.s32.f32 %v1653
        %v1718 = vcvt.s32.f32 %v1654
        %v1719 = vcvt.s32.f32 %v1655
        %v1720 = vcvt.s32.f32 %v1656
        %v1721 = vcvt.s32.f32 %v1657
        %v1722 = vcvt.s32.f32 %v1658
        %v1723 = vcvt.s32.f32 %v1659
        %v1724 = vcvt.s32.f32 %v1660
        %v1725 = vcvt.s32.f32 %v1661
        %v1726 = vcvt.s32.f32 %v1662
        %v1727 = vcvt.s32.f32 %v1663
        %v1728 = vcvt.s32.f32 %v1664
        %v1729 = vcvt.s32.f32 %v1665
        %v1730 = vcvt.s32.f32 %v1666
        %v1731 = vcvt.s32.f32 %v1667
        %v1732 = vcvt.s32.f32 %v1668
        %v1733 = vcvt.s32.f32 %v1669
        %v1734 = vcvt.s32.f32 %v1670
        %v1735 = vcvt.s32.f32 %v1671
        %v1736 = vcvt.s32.f32 %v1672
        %v1737 = vcvt.s32.f32 %v1673
        %v1738 = vcvt.s32.f32 %v1674
        %v1739 = vcvt.s32.f32 %v1675
        %v1740 = vcvt.s32.f32 %v1676
        %v1741 = vcvt.s32.f32 %v1677
        %v1742 = vcvt.s32.f32 %v1678
        %v1743 = vcvt.s32.f32 %v1679
        %v1744 = vcvt.s32.f32 %v1680
        %v1745 = vcvt.s32.f32 %v1681
        %v1746 = vcvt.s32.f32 %v1682
        %v1747 = vcvt.s32.f32 %v1683
        %v1748 = vcvt.s32.f32 %v1684
        %v1749 = vcvt.s32.f32 %v1685
        %v1750 = vcvt.s32.f32 %v1686
        %v1751 = vcvt.s32.f32 %v1687
        %v1752 = vcvt.s32.f32 %v1688
        %v1753 = vcvt.s32.f32 %v1689
        %v1754 = vcvt.s32.f32 %v1690
        %v1755 = vcvt.s32.f32 %v1691
        %v1756 = vcvt.s32.f32 %v1692
        %v1757 = vcvt.s32.f32 %v1693
        %v1758 = vcvt.s32.f32 %v1694
        %v1759 = vcvt.s32.f32 %v1695
        %v1760 = vcvt.s32.f32 %v1696
        %v1761 = vcvt.s32.f32 %v1697
        %v1762 = vcvt.s32.f32 %v1698
        %v1763 = vcvt.s32.f32 %v1699
        %v1764 = vcvt.s32.f32 %v1700
        %v1765 = vcvt.s32.f32 %v1701
        %v1766 = vcvt.s32.f32 %v1702
        %v1767 = vcvt.s32.f32 %v1703
        %v1768 = vcvt.s32.f32 %v1704
        %v1769 = vcvt.s32.f32 %v1705
        %v1770 = vcvt.s32.f32 %v1706
        %v1771 = vcvt.s32.f32 %v1707
        %v1772 = vcvt.s32.f32 %v1708
        %v1773 = vcvt.s32.f32 %v1709
        %v1774 = vcvt.s32.f32 %v1710
        %v1775 = vcvt.s32.f32 %v1711
        %v1776 = vcvt.s32.f32 %v1712
        %v1777 = vcvt.s32.f32 %v1713
        %v1778 = vcvt.s32.f32 %v1714
        %1779 = vst [vmem:[%s201] sm:$0xff] %v1715
        %1780 = vst [vmem:[%s201 + $0x8] sm:$0xff] %v1716
        %1781 = vst [vmem:[%s201 + $0x10] sm:$0xff] %v1717
        %1782 = vst [vmem:[%s201 + $0x18] sm:$0xff] %v1718
        %1783 = vst [vmem:[%s201 + $0x20] sm:$0xff] %v1719
        %1784 = vst [vmem:[%s201 + $0x28] sm:$0xff] %v1720
        %1785 = vst [vmem:[%s201 + $0x30] sm:$0xff] %v1721
        %1786 = vst [vmem:[%s201 + $0x38] sm:$0xff] %v1722
        %1787 = vst [vmem:[%s201 + $0x40] sm:$0xff] %v1723
        %1788 = vst [vmem:[%s201 + $0x48] sm:$0xff] %v1724
        %1789 = vst [vmem:[%s201 + $0x50] sm:$0xff] %v1725
        %1790 = vst [vmem:[%s201 + $0x58] sm:$0xff] %v1726
        %1791 = vst [vmem:[%s201 + $0x60] sm:$0xff] %v1727
        %1792 = vst [vmem:[%s201 + $0x68] sm:$0xff] %v1728
        %1793 = vst [vmem:[%s201 + $0x70] sm:$0xff] %v1729
        %1794 = vst [vmem:[%s201 + $0x78] sm:$0xff] %v1730
        %1795 = vst [vmem:[%s201 + $0x80] sm:$0xff] %v1731
        %1796 = vst [vmem:[%s201 + $0x88] sm:$0xff] %v1732
        %1797 = vst [vmem:[%s201 + $0x90] sm:$0xff] %v1733
        %1798 = vst [vmem:[%s201 + $0x98] sm:$0xff] %v1734
        %1799 = vst [vmem:[%s201 + $0xa0] sm:$0xff] %v1735
        %1800 = vst [vmem:[%s201 + $0xa8] sm:$0xff] %v1736
        %1801 = vst [vmem:[%s201 + $0xb0] sm:$0xff] %v1737
        %1802 = vst [vmem:[%s201 + $0xb8] sm:$0xff] %v1738
        %1803 = vst [vmem:[%s201 + $0xc0] sm:$0xff] %v1739
        %1804 = vst [vmem:[%s201 + $0xc8] sm:$0xff] %v1740
        %1805 = vst [vmem:[%s201 + $0xd0] sm:$0xff] %v1741
        %1806 = vst [vmem:[%s201 + $0xd8] sm:$0xff] %v1742
        %1807 = vst [vmem:[%s201 + $0xe0] sm:$0xff] %v1743
        %1808 = vst [vmem:[%s201 + $0xe8] sm:$0xff] %v1744
        %1809 = vst [vmem:[%s201 + $0xf0] sm:$0xff] %v1745
        %1810 = vst [vmem:[%s201 + $0xf8] sm:$0xff] %v1746
        %1811 = vst [vmem:[%s201 + $0x100] sm:$0xff] %v1747
        %1812 = vst [vmem:[%s201 + $0x108] sm:$0xff] %v1748
        %1813 = vst [vmem:[%s201 + $0x110] sm:$0xff] %v1749
        %1814 = vst [vmem:[%s201 + $0x118] sm:$0xff] %v1750
        %1815 = vst [vmem:[%s201 + $0x120] sm:$0xff] %v1751
        %1816 = vst [vmem:[%s201 + $0x128] sm:$0xff] %v1752
        %1817 = vst [vmem:[%s201 + $0x130] sm:$0xff] %v1753
        %1818 = vst [vmem:[%s201 + $0x138] sm:$0xff] %v1754
        %1819 = vst [vmem:[%s201 + $0x140] sm:$0xff] %v1755
        %1820 = vst [vmem:[%s201 + $0x148] sm:$0xff] %v1756
        %1821 = vst [vmem:[%s201 + $0x150] sm:$0xff] %v1757
        %1822 = vst [vmem:[%s201 + $0x158] sm:$0xff] %v1758
        %1823 = vst [vmem:[%s201 + $0x160] sm:$0xff] %v1759
        %1824 = vst [vmem:[%s201 + $0x168] sm:$0xff] %v1760
        %1825 = vst [vmem:[%s201 + $0x170] sm:$0xff] %v1761
        %1826 = vst [vmem:[%s201 + $0x178] sm:$0xff] %v1762
        %1827 = vst [vmem:[%s201 + $0x180] sm:$0xff] %v1763
        %1828 = vst [vmem:[%s201 + $0x188] sm:$0xff] %v1764
        %1829 = vst [vmem:[%s201 + $0x190] sm:$0xff] %v1765
        %1830 = vst [vmem:[%s201 + $0x198] sm:$0xff] %v1766
        %1831 = vst [vmem:[%s201 + $0x1a0] sm:$0xff] %v1767
        %1832 = vst [vmem:[%s201 + $0x1a8] sm:$0xff] %v1768
        %1833 = vst [vmem:[%s201 + $0x1b0] sm:$0xff] %v1769
        %1834 = vst [vmem:[%s201 + $0x1b8] sm:$0xff] %v1770
        %1835 = vst [vmem:[%s201 + $0x1c0] sm:$0xff] %v1771
        %1836 = vst [vmem:[%s201 + $0x1c8] sm:$0xff] %v1772
        %1837 = vst [vmem:[%s201 + $0x1d0] sm:$0xff] %v1773
        %1838 = vst [vmem:[%s201 + $0x1d8] sm:$0xff] %v1774
        %1839 = vst [vmem:[%s201 + $0x1e0] sm:$0xff] %v1775
        %1840 = vst [vmem:[%s201 + $0x1e8] sm:$0xff] %v1776
        %1841 = vst [vmem:[%s201 + $0x1f0] sm:$0xff] %v1777
        %1842 = vst [vmem:[%s201 + $0x1f8] sm:$0xff] %v1778
        %s1843 = sand.u32 %s110, 1
        %s1844 = scalar_lea.sflag [#allocation3], %s1843
        %s1845 = sand.u32 %s110, 1
        %s1846 = smul.addr %s1845, 512
        %s1847 = scalar_lea.vmem [#allocation2], %s1846
        // Predicated region
        $region29: #{tpu_custom_call.1} parent=27 // pred_check
          %p1848 = pneg %p120
        $region30: #{tpu_custom_call.1} parent=27 // pred_check_branch
          %1850 = sbr.rel (%p1848) target = $region32
        $region31: #{tpu_custom_call.1} parent=27 // pred_region
          %s1851 = smul.u32 32, %s23
          %s1852 = smul.u32 2, %s24
          %s1854 = ssub.s32 8192, 8192
          %1855 = vsyncadd %s1844, %s1854
          %s1856 = smul.addr %s1851, 2
          %s1857 = sadd.s32 %s1852, %s1856
          %s1858 = smul.addr %s22, 64
          %s1859 = sadd.s32 %s1857, %s1858
          %s1860 = smul.addr %s1859, 128
          %s1861 = scalar_lea.hbm %s2, %s1860
          %s1862 = sshll.u32 %s1847, 4
          %s1863 = int_to_ptr.vmem [resolvable:$true] %s1862
          %1868 = dma.vmem_to_hbm [thread:$0]  %s1863, 8192, %s1861, %s1844, 256, 256, 16
        $region32: #{tpu_custom_call.1} parent=27 // pred_fallthru
          _
      $region28: #{tpu_custom_call.1} parent=5 // pred_fallthru
        _
      %p1869 = scmp.le.s32.totalorder 2, %s11
      // Predicated region
      $region33: #{tpu_custom_call.1} parent=5 // pred_check
        %p1870 = pneg %p1869
      $region34: #{tpu_custom_call.1} parent=5 // pred_check_branch
        %1872 = sbr.rel (%p1870) target = $region36
      $region35: #{tpu_custom_call.1} parent=5 // pred_region
        %s1873 = ssub.s32 %s11, 2
        // Predicated region
        $region37: #{tpu_custom_call.1} parent=35 // pred_check
          %p1874 = pneg %p126
        $region38: #{tpu_custom_call.1} parent=35 // pred_check_branch
          %1876 = sbr.rel (%p1874) target = $region40
        $region39: #{tpu_custom_call.1} parent=35 // pred_region
          %s1877 = sand.u32 %s111, 1
          %s1878 = scalar_lea.sflag [#allocation3], %s1877
          %s1879 = sand.u32 %s111, 1
          %s1880 = smul.addr %s1879, 512
          %s1881 = scalar_lea.vmem [#allocation2], %s1880
          %1882 = dma.done %s1878, 8192
        $region40: #{tpu_custom_call.1} parent=35 // pred_fallthru
          _
      $region36: #{tpu_custom_call.1} parent=5 // pred_fallthru
        _
    $region6: #{tpu_custom_call.1} parent=1 // loop_footer
      %s15 = sadd.s32 1, %s11
    $region7: #{tpu_custom_call.1} parent=1 // loop_footer_branch
      %10 = sbr.rel target = $region3
    $region8: #{tpu_custom_call.1} parent=1 // loop_exit
      _
    %1883 = vsyncpa [#allocation3], 1
    %s1884 = scalar_lea.sflag [#allocation3], 1
    %1885 = vsyncpa %s1884, 1

</llo_original>
